<compile_context>
chip_gen: v7x
topology: tpu7x:2x2x1
jax: 0.10.0
libtpu: 0.0.40
codegen_flags: <defaults>
</compile_context>

<pallas_src>
import jax
import jax.numpy as jnp
from jax.experimental import pallas as pl
from jax.experimental.pallas import tpu as pltpu

LANE = 128


def _round_up(n: int, m: int) -> int:
    return ((n + m - 1) // m) * m


def _gnn_step_kernel(inv_ref, a_ref, x_ref, w_ref, b_ref, o_ref, x_carry):
    """One GNN layer for one batch tile.  grid = (batch_tiles, step)."""
    s = pl.program_id(1)

    # Load this batch tile's activation into the f32 carry at the first step.
    @pl.when(s == 0)
    def _():
        x_carry[...] = x_ref[...].astype(jnp.float32)

    bt, lp, dp = x_carry.shape

    # Feed the MXU at its native rate: bf16 stays bf16, everything else goes f32.
    mxu_dt = (jnp.bfloat16
              if (a_ref.dtype == jnp.bfloat16 and w_ref.dtype == jnp.bfloat16)
              else jnp.float32)

    x = x_carry[...]                                              # (bt, lp, dp) f32
    w = w_ref[0].astype(mxu_dt)                                   # (dp, dp)

    # X @ W_s  — one big M = bt*lp matmul on the MXU.
    xw = jnp.dot(x.reshape(bt * lp, dp).astype(mxu_dt), w,
                 preferred_element_type=jnp.float32).reshape(bt, lp, dp)

    # Fold the column normalization of A into xw instead of materializing normed_A:
    #   sum_j (A_ij / d_j) xw_jk == sum_j A_ij (inv_j * xw_jk).
    # inv is 0 in padded rows, so padded junk never leaks into real rows.
    xw = xw * inv_ref[...]                                        # (lp,1) broadcast

    # normed_A @ (X @ W_s) — batched over the batch tile.
    ax = jnp.einsum("bij,bjk->bik",
                    a_ref[...].astype(mxu_dt), xw.astype(mxu_dt),
                    preferred_element_type=jnp.float32)

    x_new = jnp.maximum(ax + b_ref[0], 0.0)                       # bias + ReLU (VPU, f32)
    # TODO(synk): dropout (drop > 0) not implemented; module default is drop=0.0.
    x_carry[...] = x_new

    @pl.when(s == pl.num_programs(1) - 1)
    def _():
        o_ref[...] = x_new.astype(o_ref.dtype)


def prepare_gnn_params(Ws, bs):
    """Zero-pad every W_i to a common (Dp, Dp), stack once (not per call)."""
    step = len(Ws)
    dims = [Ws[0].shape[0]] + [w.shape[1] for w in Ws]
    dp = max(_round_up(d, LANE) for d in dims)
    w_stack = jnp.zeros((step, dp, dp), Ws[0].dtype)
    b_stack = jnp.zeros((step, 1, dp), jnp.float32)
    for i, (w, b) in enumerate(zip(Ws, bs)):
        w_stack = w_stack.at[i, : w.shape[0], : w.shape[1]].set(w)
        b_stack = b_stack.at[i, 0, : b.shape[0]].set(b.astype(jnp.float32))
    return w_stack, b_stack


def gnn_relu_diff(X, A, w_stack, b_stack, hidden_dim):
    """Matches GNN_RELU_DIFF.forward(X, A) with drop == 0."""
    B, L, input_dim = X.shape
    assert A.shape == (B, L, L)
    step, dp, _ = w_stack.shape

    lp = _round_up(L, LANE)   # lane-dense A columns / matmul K / output stores

    # ---- inv = 1 / A.sum(1)[0]  (column sums of batch 0 only, as in the PyTorch
    #      code); padded entries forced to 0 so zero-padded columns stay exact. ----
    denom = jnp.sum(A[0].astype(jnp.float32), axis=0)             # (L,)
    inv_col = jnp.zeros((lp, 1), jnp.float32).at[:L, 0].set(1.0 / denom)

    # ---- zero-pad L and the feature dim (mathematically inert, sliced off) ----
    a_p = A if lp == L else jnp.pad(A, ((0, 0), (0, lp - L), (0, lp - L)))
    x_p = X
    if lp != L or dp != input_dim:
        x_p = jnp.pad(X, ((0, 0), (0, lp - L), (0, dp - input_dim)))

    # ---- batch tile: amortize per-grid-step overhead but keep >= 2 parallel grid
    #      points (two TensorCores on v7x) and bound the carried-activation tile. ----
    bt = 1
    for cand in range(2, B + 1):
        if B % cand:
            continue
        if cand * lp * dp * 4 > (2 << 20):
            break
        if B // cand < 2:
            break
        bt = cand
    bg = B // bt
    # TODO(synk): for B == 1 on v7x a second parallel axis over row-tiles of A
    # would be needed to keep both TensorCores busy.

    # ---- per-generation VMEM budget (v5e/v6e 128 MiB physical, v7x 64 MiB) ----
    try:
        vmem_cap = int(getattr(pltpu.get_tpu_info(), "vmem_capacity_bytes", 64 << 20))
        if vmem_cap <= 0:
            vmem_cap = 64 << 20
    except Exception:
        vmem_cap = 64 << 20                    # conservative fallback (v7x per-core)
    need = (2 * bt * lp * lp * a_p.dtype.itemsize          # A block (double-buffered)
            + 2 * bt * lp * dp * x_p.dtype.itemsize        # X block
            + 2 * dp * dp * w_stack.dtype.itemsize         # streamed W slice
            + 2 * dp * 4                                   # streamed bias slice
            + lp * 4                                       # inv
            + 2 * bt * lp * dp * X.dtype.itemsize          # out block
            + 5 * bt * lp * dp * 4)                        # carry scratch + temporaries
    vmem_limit = int(min(max(2 * need, 32 << 20), int(0.9 * vmem_cap)))

    out_shape = jax.ShapeDtypeStruct((B, lp, dp), X.dtype)

    def run(single_buffer_inv):
        if single_buffer_inv:
            # inv never changes across the grid -> no need to double-buffer it.
            inv_spec = pl.BlockSpec((lp, 1), lambda b, s: (0, 0),
                                    pipeline_mode=pl.Buffered(1))
        else:
            inv_spec = pl.BlockSpec((lp, 1), lambda b, s: (0, 0))
        grid_spec = pltpu.PrefetchScalarGridSpec(
            num_scalar_prefetch=0,
            grid=(bg, step),
            in_specs=[
                inv_spec,
                pl.BlockSpec((bt, lp, lp), lambda b, s: (b, 0, 0)),   # A batch tile
                pl.BlockSpec((bt, lp, dp), lambda b, s: (b, 0, 0)),   # X batch tile
                pl.BlockSpec((1, dp, dp), lambda b, s: (s, 0, 0)),    # W_s (streamed)
                pl.BlockSpec((1, 1, dp), lambda b, s: (s, 0, 0)),     # b_s (streamed)
            ],
            out_specs=pl.BlockSpec((bt, lp, dp), lambda b, s: (b, 0, 0)),
            scratch_shapes=[pltpu.VMEM((bt, lp, dp), jnp.float32)],   # carried activation
        )
        return pl.pallas_call(
            _gnn_step_kernel,
            out_shape=out_shape,
            grid_spec=grid_spec,
            compiler_params=pltpu.CompilerParams(
                dimension_semantics=("parallel", "arbitrary"),
                vmem_limit_bytes=vmem_limit),
        )(inv_col, a_p, x_p, w_stack, b_stack)

    try:
        out = run(True)
    except Exception:
        # pl.Buffered(1) unsupported on this jax/libtpu -> default double-buffering.
        out = run(False)

    if lp == L and dp == hidden_dim:
        return out                              # avoid an extra HBM pass when aligned
    return out[:, :L, :hidden_dim]


if __name__ == "__main__":
    key = jax.random.PRNGKey(0)
    B, L, input_dim, hidden_dim, step = 2, 8, 32, 32, 2

    kx, ka, kw, kb = jax.random.split(key, 4)
    X = jax.random.normal(kx, (B, L, input_dim), dtype=jnp.float32)
    # strictly positive A so the column-sum normalization is well defined
    A = jax.random.uniform(ka, (B, L, L), dtype=jnp.float32, minval=0.1, maxval=1.0)

    wkeys = jax.random.split(kw, step)
    bkeys = jax.random.split(kb, step)
    Ws, bs = [], []
    din = input_dim
    for i in range(step):
        Ws.append(0.1 * jax.random.normal(wkeys[i], (din, hidden_dim), dtype=jnp.float32))
        bs.append(0.1 * jax.random.normal(bkeys[i], (hidden_dim,), dtype=jnp.float32))
        din = hidden_dim

    w_stack, b_stack = prepare_gnn_params(Ws, bs)   # pad/stack once, not per call
    Y = gnn_relu_diff(X, A, w_stack, b_stack, hidden_dim)
    Y = jax.block_until_ready(Y)

    # Pure-JAX reference mirroring the PyTorch forward exactly.
    normed_A = A / jnp.sum(A, axis=1, keepdims=True)[0]
    Xr = X
    for i in range(step):
        Xr = jnp.matmul(Xr, Ws[i])
        Xr = jnp.matmul(normed_A, Xr)
        Xr = jnp.maximum(Xr + bs[i], 0.0)

    assert Y.shape == (B, L, hidden_dim)
    assert jnp.allclose(Y, Xr, atol=1e-4, rtol=1e-4), "mismatch vs reference"
    print("KERNEL_OK")
</pallas_src>

<mosaic_0001>
module attributes {stable_mosaic.version = 11 : i64} {
  func.func @_gnn_step_kernel(%arg0: i32, %arg1: i32, %arg2: memref<128x1xf32, #tpu.memory_space<vmem>>, %arg3: memref<1x128x128xf32, #tpu.memory_space<vmem>>, %arg4: memref<1x128x128xf32, #tpu.memory_space<vmem>>, %arg5: memref<1x128x128xf32, #tpu.memory_space<vmem>>, %arg6: memref<1x1x128xf32, #tpu.memory_space<vmem>>, %arg7: memref<1x128x128xf32, #tpu.memory_space<vmem>>, %arg8: memref<1x128x128xf32, #tpu.memory_space<vmem>>) attributes {dimension_semantics = [#tpu.dimension_semantics<parallel>, #tpu.dimension_semantics<arbitrary>], iteration_bounds = array<i64: 2, 2>, scalar_prefetch = 0 : i64, scratch_operands = 1 : i64, tpu.core_type = #tpu.core_type<tc>, window_params = [{pipeline_mode = #tpu.pipeline_mode<synchronous>, transform_indices = @transform_0, window_bounds = array<i64: 128, 1>}, {transform_indices = @transform_1, window_bounds = array<i64: 1, 128, 128>}, {transform_indices = @transform_2, window_bounds = array<i64: 1, 128, 128>}, {transform_indices = @transform_3, window_bounds = array<i64: 1, 128, 128>}, {transform_indices = @transform_4, window_bounds = array<i64: 1, 1, 128>}, {transform_indices = @transform_5, window_bounds = array<i64: 1, 128, 128>}]} {
    %c0_i32 = arith.constant 0 : i32
    %0 = arith.cmpi eq, %arg1, %c0_i32 : i32
    %1 = arith.extui %0 : i1 to i32
    %c0_i32_0 = arith.constant 0 : i32
    %2 = arith.cmpi ne, %1, %c0_i32_0 : i32
    scf.if %2 {
      %c0_20 = arith.constant 0 : index
      %c0_21 = arith.constant 0 : index
      %c0_22 = arith.constant 0 : index
      %26 = vector.load %arg4[%c0_20, %c0_21, %c0_22] : memref<1x128x128xf32, #tpu.memory_space<vmem>>, vector<1x128x128xf32>
      %c0_23 = arith.constant 0 : index
      %c0_24 = arith.constant 0 : index
      %c0_25 = arith.constant 0 : index
      %27 = vector.load %arg8[%c0_23, %c0_24, %c0_25] : memref<1x128x128xf32, #tpu.memory_space<vmem>>, vector<1x128x128xf32>
      tpu.vector_store %arg8[%c0_23, %c0_24, %c0_25], %26 {strides = array<i32>} : memref<1x128x128xf32, #tpu.memory_space<vmem>>, vector<1x128x128xf32>,
    } else {
    }
    %c0 = arith.constant 0 : index
    %c0_1 = arith.constant 0 : index
    %c0_2 = arith.constant 0 : index
    %3 = vector.load %arg8[%c0, %c0_1, %c0_2] : memref<1x128x128xf32, #tpu.memory_space<vmem>>, vector<1x128x128xf32>
    %c0_3 = arith.constant 0 : index
    %c0_4 = arith.constant 0 : index
    %c0_5 = arith.constant 0 : index
    %4 = vector.load %arg5[%c0_3, %c0_4, %c0_5] : memref<1x128x128xf32, #tpu.memory_space<vmem>>, vector<1x128x128xf32>
    %5 = vector.shape_cast %4 : vector<1x128x128xf32> to vector<128x128xf32>
    %6 = vector.shape_cast %3 : vector<1x128x128xf32> to vector<128x128xf32>
    %cst = arith.constant dense<0.000000e+00> : vector<128x128xf32>
    %7 = tpu.matmul %6, %5, %cst {dimension_numbers = #tpu.dot_dimension_numbers<[1], [0], [0], [1], [0, 0, 1, 1], [], []>} : vector<128x128xf32>, vector<128x128xf32>, vector<128x128xf32> -> vector<128x128xf32>
    %8 = vector.shape_cast %7 : vector<128x128xf32> to vector<1x128x128xf32>
    %c0_6 = arith.constant 0 : index
    %c0_7 = arith.constant 0 : index
    %9 = vector.load %arg2[%c0_6, %c0_7] : memref<128x1xf32, #tpu.memory_space<vmem>>, vector<128x1xf32>
    %10 = vector.shape_cast %9 : vector<128x1xf32> to vector<1x128x1xf32>
    %11 = vector.broadcast %10 : vector<1x128x1xf32> to vector<1x128x128xf32>
    %12 = arith.mulf %8, %11 : vector<1x128x128xf32>
    %c0_8 = arith.constant 0 : index
    %c0_9 = arith.constant 0 : index
    %c0_10 = arith.constant 0 : index
    %13 = vector.load %arg3[%c0_8, %c0_9, %c0_10] : memref<1x128x128xf32, #tpu.memory_space<vmem>>, vector<1x128x128xf32>
    "tpu.trace_start"() <{level = 10 : i32, message = "bij,bjk->bik"}> : () -> ()
    %cst_11 = arith.constant dense<0.000000e+00> : vector<1x128x128xf32>
    %14 = tpu.matmul %13, %12, %cst_11 {dimension_numbers = #tpu.dot_dimension_numbers<[2], [1], [1], [2], [0, 0, 0, 1, 1, 2], [0], [0]>} : vector<1x128x128xf32>, vector<1x128x128xf32>, vector<1x128x128xf32> -> vector<1x128x128xf32>
    "tpu.trace_stop"() : () -> ()
    %c0_12 = arith.constant 0 : index
    %c0_13 = arith.constant 0 : index
    %c0_14 = arith.constant 0 : index
    %15 = vector.load %arg6[%c0_12, %c0_13, %c0_14] : memref<1x1x128xf32, #tpu.memory_space<vmem>>, vector<1x1x128xf32>
    %16 = vector.shape_cast %15 : vector<1x1x128xf32> to vector<1x128xf32>
    %17 = vector.shape_cast %16 : vector<1x128xf32> to vector<1x1x128xf32>
    %18 = vector.broadcast %17 : vector<1x1x128xf32> to vector<1x128x128xf32>
    %19 = arith.addf %14, %18 : vector<1x128x128xf32>
    %cst_15 = arith.constant 0.000000e+00 : f32
    %20 = vector.broadcast %cst_15 : f32 to vector<1x128x128xf32>
    %21 = arith.maximumf %19, %20 : vector<1x128x128xf32>
    %c0_16 = arith.constant 0 : index
    %c0_17 = arith.constant 0 : index
    %c0_18 = arith.constant 0 : index
    %22 = vector.load %arg8[%c0_16, %c0_17, %c0_18] : memref<1x128x128xf32, #tpu.memory_space<vmem>>, vector<1x128x128xf32>
    tpu.vector_store %arg8[%c0_16, %c0_17, %c0_18], %21 {strides = array<i32>} : memref<1x128x128xf32, #tpu.memory_space<vmem>>, vector<1x128x128xf32>,
    %c1_i32 = arith.constant 1 : i32
    %23 = arith.cmpi eq, %arg1, %c1_i32 : i32
    %24 = arith.extui %23 : i1 to i32
    %c0_i32_19 = arith.constant 0 : i32
    %25 = arith.cmpi ne, %24, %c0_i32_19 : i32
    scf.if %25 {
      %c0_20 = arith.constant 0 : index
      %c0_21 = arith.constant 0 : index
      %c0_22 = arith.constant 0 : index
      %26 = vector.load %arg7[%c0_20, %c0_21, %c0_22] : memref<1x128x128xf32, #tpu.memory_space<vmem>>, vector<1x128x128xf32>
      tpu.vector_store %arg7[%c0_20, %c0_21, %c0_22], %21 {strides = array<i32>} : memref<1x128x128xf32, #tpu.memory_space<vmem>>, vector<1x128x128xf32>,
    } else {
    }
    return
  }
  func.func @transform_0(%arg0: i32, %arg1: i32) -> (i32, i32) {
    %c0_i32 = arith.constant 0 : i32
    %c0_i32_0 = arith.constant 0 : i32
    %c0_i32_1 = arith.constant 0 : i32
    return %c0_i32, %c0_i32_0 : i32, i32
  }
  func.func @transform_1(%arg0: i32, %arg1: i32) -> (i32, i32, i32) {
    %c0_i32 = arith.constant 0 : i32
    %c0_i32_0 = arith.constant 0 : i32
    %c0_i32_1 = arith.constant 0 : i32
    return %arg0, %c0_i32, %c0_i32_0 : i32, i32, i32
  }
  func.func @transform_2(%arg0: i32, %arg1: i32) -> (i32, i32, i32) {
    %c0_i32 = arith.constant 0 : i32
    %c0_i32_0 = arith.constant 0 : i32
    %c0_i32_1 = arith.constant 0 : i32
    return %arg0, %c0_i32, %c0_i32_0 : i32, i32, i32
  }
  func.func @transform_3(%arg0: i32, %arg1: i32) -> (i32, i32, i32) {
    %c0_i32 = arith.constant 0 : i32
    %c0_i32_0 = arith.constant 0 : i32
    %c0_i32_1 = arith.constant 0 : i32
    return %arg1, %c0_i32, %c0_i32_0 : i32, i32, i32
  }
  func.func @transform_4(%arg0: i32, %arg1: i32) -> (i32, i32, i32) {
    %c0_i32 = arith.constant 0 : i32
    %c0_i32_0 = arith.constant 0 : i32
    %c0_i32_1 = arith.constant 0 : i32
    return %arg1, %c0_i32, %c0_i32_0 : i32, i32, i32
  }
  func.func @transform_5(%arg0: i32, %arg1: i32) -> (i32, i32, i32) {
    %c0_i32 = arith.constant 0 : i32
    %c0_i32_0 = arith.constant 0 : i32
    %c0_i32_1 = arith.constant 0 : i32
    return %arg0, %c0_i32, %c0_i32_0 : i32, i32, i32
  }
}

module attributes {stable_mosaic.version = 11 : i64} {
  func.func @_gnn_step_kernel(%arg0: i32, %arg1: i32, %arg2: memref<128x1xf32, #tpu.memory_space<vmem>>, %arg3: memref<1x128x128xf32, #tpu.memory_space<vmem>>, %arg4: memref<1x128x128xf32, #tpu.memory_space<vmem>>, %arg5: memref<1x128x128xf32, #tpu.memory_space<vmem>>, %arg6: memref<1x1x128xf32, #tpu.memory_space<vmem>>, %arg7: memref<1x128x128xf32, #tpu.memory_space<vmem>>, %arg8: memref<1x128x128xf32, #tpu.memory_space<vmem>>) attributes {dimension_semantics = [#tpu.dimension_semantics<parallel>, #tpu.dimension_semantics<arbitrary>], iteration_bounds = array<i64: 2, 2>, scalar_prefetch = 0 : i64, scratch_operands = 1 : i64, tpu.core_type = #tpu.core_type<tc>, window_params = [{pipeline_mode = #tpu.pipeline_mode<synchronous>, transform_indices = @transform_0, window_bounds = array<i64: 128, 1>}, {transform_indices = @transform_1, window_bounds = array<i64: 1, 128, 128>}, {transform_indices = @transform_2, window_bounds = array<i64: 1, 128, 128>}, {transform_indices = @transform_3, window_bounds = array<i64: 1, 128, 128>}, {transform_indices = @transform_4, window_bounds = array<i64: 1, 1, 128>}, {transform_indices = @transform_5, window_bounds = array<i64: 1, 128, 128>}]} {
    %c0_i32 = arith.constant 0 : i32
    %0 = arith.cmpi eq, %arg1, %c0_i32 : i32
    %1 = arith.extui %0 : i1 to i32
    %c0_i32_0 = arith.constant 0 : i32
    %2 = arith.cmpi ne, %1, %c0_i32_0 : i32
    scf.if %2 {
      %c0_20 = arith.constant 0 : index
      %c0_21 = arith.constant 0 : index
      %c0_22 = arith.constant 0 : index
      %26 = vector.load %arg4[%c0_20, %c0_21, %c0_22] : memref<1x128x128xf32, #tpu.memory_space<vmem>>, vector<1x128x128xf32>
      %c0_23 = arith.constant 0 : index
      %c0_24 = arith.constant 0 : index
      %c0_25 = arith.constant 0 : index
      %27 = vector.load %arg8[%c0_23, %c0_24, %c0_25] : memref<1x128x128xf32, #tpu.memory_space<vmem>>, vector<1x128x128xf32>
      tpu.vector_store %arg8[%c0_23, %c0_24, %c0_25], %26 {strides = array<i32>} : memref<1x128x128xf32, #tpu.memory_space<vmem>>, vector<1x128x128xf32>,
    } else {
    }
    %c0 = arith.constant 0 : index
    %c0_1 = arith.constant 0 : index
    %c0_2 = arith.constant 0 : index
    %3 = vector.load %arg8[%c0, %c0_1, %c0_2] : memref<1x128x128xf32, #tpu.memory_space<vmem>>, vector<1x128x128xf32>
    %c0_3 = arith.constant 0 : index
    %c0_4 = arith.constant 0 : index
    %c0_5 = arith.constant 0 : index
    %4 = vector.load %arg5[%c0_3, %c0_4, %c0_5] : memref<1x128x128xf32, #tpu.memory_space<vmem>>, vector<1x128x128xf32>
    %5 = vector.shape_cast %4 : vector<1x128x128xf32> to vector<128x128xf32>
    %6 = vector.shape_cast %3 : vector<1x128x128xf32> to vector<128x128xf32>
    %cst = arith.constant dense<0.000000e+00> : vector<128x128xf32>
    %7 = tpu.matmul %6, %5, %cst {dimension_numbers = #tpu.dot_dimension_numbers<[1], [0], [0], [1], [0, 0, 1, 1], [], []>} : vector<128x128xf32>, vector<128x128xf32>, vector<128x128xf32> -> vector<128x128xf32>
    %8 = vector.shape_cast %7 : vector<128x128xf32> to vector<1x128x128xf32>
    %c0_6 = arith.constant 0 : index
    %c0_7 = arith.constant 0 : index
    %9 = vector.load %arg2[%c0_6, %c0_7] : memref<128x1xf32, #tpu.memory_space<vmem>>, vector<128x1xf32>
    %10 = vector.shape_cast %9 : vector<128x1xf32> to vector<1x128x1xf32>
    %11 = vector.broadcast %10 : vector<1x128x1xf32> to vector<1x128x128xf32>
    %12 = arith.mulf %8, %11 : vector<1x128x128xf32>
    %c0_8 = arith.constant 0 : index
    %c0_9 = arith.constant 0 : index
    %c0_10 = arith.constant 0 : index
    %13 = vector.load %arg3[%c0_8, %c0_9, %c0_10] : memref<1x128x128xf32, #tpu.memory_space<vmem>>, vector<1x128x128xf32>
    "tpu.trace_start"() <{level = 10 : i32, message = "bij,bjk->bik"}> : () -> ()
    %cst_11 = arith.constant dense<0.000000e+00> : vector<1x128x128xf32>
    %14 = tpu.matmul %13, %12, %cst_11 {dimension_numbers = #tpu.dot_dimension_numbers<[2], [1], [1], [2], [0, 0, 0, 1, 1, 2], [0], [0]>} : vector<1x128x128xf32>, vector<1x128x128xf32>, vector<1x128x128xf32> -> vector<1x128x128xf32>
    "tpu.trace_stop"() : () -> ()
    %c0_12 = arith.constant 0 : index
    %c0_13 = arith.constant 0 : index
    %c0_14 = arith.constant 0 : index
    %15 = vector.load %arg6[%c0_12, %c0_13, %c0_14] : memref<1x1x128xf32, #tpu.memory_space<vmem>>, vector<1x1x128xf32>
    %16 = vector.shape_cast %15 : vector<1x1x128xf32> to vector<1x128xf32>
    %17 = vector.shape_cast %16 : vector<1x128xf32> to vector<1x1x128xf32>
    %18 = vector.broadcast %17 : vector<1x1x128xf32> to vector<1x128x128xf32>
    %19 = arith.addf %14, %18 : vector<1x128x128xf32>
    %cst_15 = arith.constant 0.000000e+00 : f32
    %20 = vector.broadcast %cst_15 : f32 to vector<1x128x128xf32>
    %21 = arith.maximumf %19, %20 : vector<1x128x128xf32>
    %c0_16 = arith.constant 0 : index
    %c0_17 = arith.constant 0 : index
    %c0_18 = arith.constant 0 : index
    %22 = vector.load %arg8[%c0_16, %c0_17, %c0_18] : memref<1x128x128xf32, #tpu.memory_space<vmem>>, vector<1x128x128xf32>
    tpu.vector_store %arg8[%c0_16, %c0_17, %c0_18], %21 {strides = array<i32>} : memref<1x128x128xf32, #tpu.memory_space<vmem>>, vector<1x128x128xf32>,
    %c1_i32 = arith.constant 1 : i32
    %23 = arith.cmpi eq, %arg1, %c1_i32 : i32
    %24 = arith.extui %23 : i1 to i32
    %c0_i32_19 = arith.constant 0 : i32
    %25 = arith.cmpi ne, %24, %c0_i32_19 : i32
    scf.if %25 {
      %c0_20 = arith.constant 0 : index
      %c0_21 = arith.constant 0 : index
      %c0_22 = arith.constant 0 : index
      %26 = vector.load %arg7[%c0_20, %c0_21, %c0_22] : memref<1x128x128xf32, #tpu.memory_space<vmem>>, vector<1x128x128xf32>
      tpu.vector_store %arg7[%c0_20, %c0_21, %c0_22], %21 {strides = array<i32>} : memref<1x128x128xf32, #tpu.memory_space<vmem>>, vector<1x128x128xf32>,
    } else {
    }
    return
  }
  func.func @transform_0(%arg0: i32, %arg1: i32) -> (i32, i32) {
    %c0_i32 = arith.constant 0 : i32
    %c0_i32_0 = arith.constant 0 : i32
    %c0_i32_1 = arith.constant 0 : i32
    return %c0_i32, %c0_i32_0 : i32, i32
  }
  func.func @transform_1(%arg0: i32, %arg1: i32) -> (i32, i32, i32) {
    %c0_i32 = arith.constant 0 : i32
    %c0_i32_0 = arith.constant 0 : i32
    %c0_i32_1 = arith.constant 0 : i32
    return %arg0, %c0_i32, %c0_i32_0 : i32, i32, i32
  }
  func.func @transform_2(%arg0: i32, %arg1: i32) -> (i32, i32, i32) {
    %c0_i32 = arith.constant 0 : i32
    %c0_i32_0 = arith.constant 0 : i32
    %c0_i32_1 = arith.constant 0 : i32
    return %arg0, %c0_i32, %c0_i32_0 : i32, i32, i32
  }
  func.func @transform_3(%arg0: i32, %arg1: i32) -> (i32, i32, i32) {
    %c0_i32 = arith.constant 0 : i32
    %c0_i32_0 = arith.constant 0 : i32
    %c0_i32_1 = arith.constant 0 : i32
    return %arg1, %c0_i32, %c0_i32_0 : i32, i32, i32
  }
  func.func @transform_4(%arg0: i32, %arg1: i32) -> (i32, i32, i32) {
    %c0_i32 = arith.constant 0 : i32
    %c0_i32_0 = arith.constant 0 : i32
    %c0_i32_1 = arith.constant 0 : i32
    return %arg1, %c0_i32, %c0_i32_0 : i32, i32, i32
  }
  func.func @transform_5(%arg0: i32, %arg1: i32) -> (i32, i32, i32) {
    %c0_i32 = arith.constant 0 : i32
    %c0_i32_0 = arith.constant 0 : i32
    %c0_i32_1 = arith.constant 0 : i32
    return %arg0, %c0_i32, %c0_i32_0 : i32, i32, i32
  }
}

</mosaic_0001>

<llo_original>
// kernel: tpu_custom_call.1
$region0: #{tpu_custom_call.1}
  #allocation0 [shape = 'u32[]', space=smem, size = 0x4, offset = 0x4, fixed_abs, tag = 'smem constant byte address 0x4 - core index']
  #allocation1 [shape = 'u32[144,128]{1,0:T(1,128)}', space=vmem, size = 0x12000, scoped, tag = 'internal scratch']
  #allocation2 [shape = 'f32[1,128,128]{2,1,0:T(8,128)}', space=vmem, size = 0x10000, scoped, tag = 'scratch operand']
  %s0 = inlined_call_operand.vmem [shape: f32[128,1], index: 0, kind: input, shape index: {}]
  %s1 = inlined_call_operand.hbm [shape: f32[2,128,128], index: 1, kind: input, shape index: {}]
  %s2 = inlined_call_operand.hbm [shape: f32[2,128,128], index: 2, kind: input, shape index: {}]
  %s3 = inlined_call_operand.hbm [shape: f32[2,128,128], index: 3, kind: input, shape index: {}]
  %s4 = inlined_call_operand.vmem [shape: f32[2,1,128], index: 4, kind: input, shape index: {}]
  %s5 = inlined_call_operand.hbm [shape: f32[2,128,128], index: 5, kind: output, shape index: {}]
  %s6 = sld [smem:[#allocation0]]
  $region73: #{tpu_custom_call.1} parent=0
    _
  %s8 = ssub.s32 1, %s6
  %s9 = scalar_select 0, %s8, %s6
  $region1: #{tpu_custom_call.1} parent=0
    #allocation3 [shape = 'u8[131072]{0}', space=vmem, size = 0x20000, scoped, tag = 'input window, operand 1']
    #allocation4 [shape = 's32[2]{0}', space=sflag, size = 0x8, scoped, tag = 'scoped memory for tpu_custom_call.1']
    #allocation5 [shape = 's32[2]{0}', space=sflag, size = 0x8, scoped, tag = 'scoped memory for tpu_custom_call.1']
    #allocation6 [shape = 'u8[131072]{0}', space=vmem, size = 0x20000, scoped, tag = 'input window, operand 2']
    #allocation7 [shape = 's32[2]{0}', space=sflag, size = 0x8, scoped, tag = 'scoped memory for tpu_custom_call.1']
    #allocation8 [shape = 'u8[131072]{0}', space=vmem, size = 0x20000, scoped, tag = 'input window, operand 3']
    #allocation9 [shape = 'u8[131072]{0}', space=vmem, size = 0x20000, scoped, tag = 'output window, operand 0']
    %10 = vsyncpa [#allocation4], 0
    %s11 = scalar_lea.sflag [#allocation4], 1
    %12 = vsyncpa %s11, 0
    %13 = vsyncpa [#allocation7], 0
    %s14 = scalar_lea.sflag [#allocation7], 1
    %15 = vsyncpa %s14, 0
    %16 = vsyncpa [#allocation5], 0
    %s17 = scalar_lea.sflag [#allocation5], 1
    %18 = vsyncpa %s17, 0
    loop: start=0, step=1, limit=6
    $region2: #{tpu_custom_call.1} parent=1 // loop_pre_header
      _
    $region3: #{tpu_custom_call.1} parent=1 // loop_header
      %s20 = sphi 0, %s24
      %p21 = scmp.ge.s32.totalorder %s20, 6
      %s27 = sphi 0, %s39
      %s28 = sphi 0, %s35
      %s29 = sphi 0, %s27
      %s30 = sphi 0, %s28
      %s31 = sphi 0, %s29
      %s32 = sphi 0, %s30
      %s40 = sphi 0, %s40
      %s42 = sphi 0, %s40
      %s43 = sphi 0, %s42
      %s57 = sphi 0, %s43
      %s63 = sphi 0, %s65
      %s66 = sphi 0, %s63
      %s67 = sphi 0, %s66
      %s83 = sphi 0, %s67
      %s89 = sphi 0, %s91
      %s92 = sphi 0, %s89
      %s93 = sphi 0, %s92
      %s109 = sphi 0, %s93
      %s115 = sphi 0, %s117
      %s118 = sphi 0, %s115
      %s119 = sphi 0, %s118
      %s135 = sphi 0, %s119
      %s141 = sphi 0, %s143
      %s144 = sphi 0, %s141
      %s145 = sphi 0, %s144
      %s161 = sphi 0, %s145
      %s167 = sphi 0, %s169
      %s170 = sphi 0, %s167
      %s171 = sphi 0, %s170
      %s187 = sphi 0, %s171
    $region4: #{tpu_custom_call.1} parent=1 // loop_header_branch
      %23 = sbr.rel (%p21) target = $region8
    $region5: #{tpu_custom_call.1} parent=1 // loop_body
      %s25 = ssub.s32 %s20, 1
      %s26 = ssub.s32 %s20, 2
      %s33 = sadd.s32 1, %s28
      %p34 = scmp.ge.s32.totalorder %s33, 2
      %s35 = scalar_select %p34, 0, %s33
      %s36 = sadd.s32 1, %s27
      %s37 = scalar_select %p34, %s36, %s27
      %p38 = scmp.ge.s32.totalorder %s37, 2
      %s39 = scalar_select %p38, 0, %s37
      %s41 = sadd.s32 %s40, 1
      %p44 = scmp.eq.s32.totalorder %s20, 3
      %p45 = scmp.ne.s32.totalorder %s40, %s42
      %p46 = scmp.eq.s32.totalorder %s20, 0
      %p47 = por %p45, %p46
      %p48 = scmp.ne.s32.totalorder %s40, %s42
      %p49 = scmp.eq.s32.totalorder %s25, 3
      %p50 = por %p48, %p49
      %p51 = scmp.ne.s32.totalorder %s42, %s43
      %p52 = scmp.eq.s32.totalorder %s25, 0
      %p53 = por %p51, %p52
      %p54 = scmp.ne.s32.totalorder %s42, %s43
      %p55 = scmp.eq.s32.totalorder %s26, 3
      %p56 = por %p54, %p55
      %p58 = scmp.ne.s32.totalorder %s43, %s57
      %p59 = scmp.eq.s32.totalorder %s26, 0
      %p60 = por %p58, %p59
      %s61 = ssub.s32 %s27, %s39
      %p62 = scmp.eq.s32.totalorder %s61, 0
      %s64 = sadd.s32 %s63, 1
      %s65 = scalar_select %p62, %s63, %s64
      %p68 = pneg %p62
      %p69 = scmp.eq.s32.totalorder %s20, 3
      %p70 = por %p68, %p69
      %p71 = scmp.ne.s32.totalorder %s63, %s66
      %p72 = scmp.eq.s32.totalorder %s20, 0
      %p73 = por %p71, %p72
      %p74 = scmp.ne.s32.totalorder %s63, %s66
      %p75 = scmp.eq.s32.totalorder %s25, 3
      %p76 = por %p74, %p75
      %p77 = scmp.ne.s32.totalorder %s66, %s67
      %p78 = scmp.eq.s32.totalorder %s25, 0
      %p79 = por %p77, %p78
      %p80 = scmp.ne.s32.totalorder %s66, %s67
      %p81 = scmp.eq.s32.totalorder %s26, 3
      %p82 = por %p80, %p81
      %p84 = scmp.ne.s32.totalorder %s67, %s83
      %p85 = scmp.eq.s32.totalorder %s26, 0
      %p86 = por %p84, %p85
      %s87 = ssub.s32 %s27, %s39
      %p88 = scmp.eq.s32.totalorder %s87, 0
      %s90 = sadd.s32 %s89, 1
      %s91 = scalar_select %p88, %s89, %s90
      %p94 = pneg %p88
      %p95 = scmp.eq.s32.totalorder %s20, 3
      %p96 = por %p94, %p95
      %p97 = scmp.ne.s32.totalorder %s89, %s92
      %p98 = scmp.eq.s32.totalorder %s20, 0
      %p99 = por %p97, %p98
      %p100 = scmp.ne.s32.totalorder %s89, %s92
      %p101 = scmp.eq.s32.totalorder %s25, 3
      %p102 = por %p100, %p101
      %p103 = scmp.ne.s32.totalorder %s92, %s93
      %p104 = scmp.eq.s32.totalorder %s25, 0
      %p105 = por %p103, %p104
      %p106 = scmp.ne.s32.totalorder %s92, %s93
      %p107 = scmp.eq.s32.totalorder %s26, 3
      %p108 = por %p106, %p107
      %p110 = scmp.ne.s32.totalorder %s93, %s109
      %p111 = scmp.eq.s32.totalorder %s26, 0
      %p112 = por %p110, %p111
      %s113 = ssub.s32 %s28, %s35
      %p114 = scmp.eq.s32.totalorder %s113, 0
      %s116 = sadd.s32 %s115, 1
      %s117 = scalar_select %p114, %s115, %s116
      %p120 = pneg %p114
      %p121 = scmp.eq.s32.totalorder %s20, 3
      %p122 = por %p120, %p121
      %p123 = scmp.ne.s32.totalorder %s115, %s118
      %p124 = scmp.eq.s32.totalorder %s20, 0
      %p125 = por %p123, %p124
      %p126 = scmp.ne.s32.totalorder %s115, %s118
      %p127 = scmp.eq.s32.totalorder %s25, 3
      %p128 = por %p126, %p127
      %p129 = scmp.ne.s32.totalorder %s118, %s119
      %p130 = scmp.eq.s32.totalorder %s25, 0
      %p131 = por %p129, %p130
      %p132 = scmp.ne.s32.totalorder %s118, %s119
      %p133 = scmp.eq.s32.totalorder %s26, 3
      %p134 = por %p132, %p133
      %p136 = scmp.ne.s32.totalorder %s119, %s135
      %p137 = scmp.eq.s32.totalorder %s26, 0
      %p138 = por %p136, %p137
      %s139 = ssub.s32 %s28, %s35
      %p140 = scmp.eq.s32.totalorder %s139, 0
      %s142 = sadd.s32 %s141, 1
      %s143 = scalar_select %p140, %s141, %s142
      %p146 = pneg %p140
      %p147 = scmp.eq.s32.totalorder %s20, 3
      %p148 = por %p146, %p147
      %p149 = scmp.ne.s32.totalorder %s141, %s144
      %p150 = scmp.eq.s32.totalorder %s20, 0
      %p151 = por %p149, %p150
      %p152 = scmp.ne.s32.totalorder %s141, %s144
      %p153 = scmp.eq.s32.totalorder %s25, 3
      %p154 = por %p152, %p153
      %p155 = scmp.ne.s32.totalorder %s144, %s145
      %p156 = scmp.eq.s32.totalorder %s25, 0
      %p157 = por %p155, %p156
      %p158 = scmp.ne.s32.totalorder %s144, %s145
      %p159 = scmp.eq.s32.totalorder %s26, 3
      %p160 = por %p158, %p159
      %p162 = scmp.ne.s32.totalorder %s145, %s161
      %p163 = scmp.eq.s32.totalorder %s26, 0
      %p164 = por %p162, %p163
      %s165 = ssub.s32 %s27, %s39
      %p166 = scmp.eq.s32.totalorder %s165, 0
      %s168 = sadd.s32 %s167, 1
      %s169 = scalar_select %p166, %s167, %s168
      %p172 = pneg %p166
      %p173 = scmp.eq.s32.totalorder %s20, 3
      %p174 = por %p172, %p173
      %p175 = scmp.ne.s32.totalorder %s167, %s170
      %p176 = scmp.eq.s32.totalorder %s20, 0
      %p177 = por %p175, %p176
      %p178 = scmp.ne.s32.totalorder %s167, %s170
      %p179 = scmp.eq.s32.totalorder %s25, 3
      %p180 = por %p178, %p179
      %p181 = scmp.ne.s32.totalorder %s170, %s171
      %p182 = scmp.eq.s32.totalorder %s25, 0
      %p183 = por %p181, %p182
      %p184 = scmp.ne.s32.totalorder %s170, %s171
      %p185 = scmp.eq.s32.totalorder %s26, 3
      %p186 = por %p184, %p185
      %p188 = scmp.ne.s32.totalorder %s171, %s187
      %p189 = scmp.eq.s32.totalorder %s26, 0
      %p190 = por %p188, %p189
      %p191 = scmp.le.s32.totalorder 1, %s20
      %p192 = scmp.lt.s32.totalorder %s20, 5
      %p193 = pnand %p191, %p192
      %p194 = pneg %p193
      // Predicated region
      $region9: #{tpu_custom_call.1} parent=5 // pred_check
        _
      $region10: #{tpu_custom_call.1} parent=5 // pred_check_branch
        %196 = sbr.rel (%p193) target = $region12
      $region11: #{tpu_custom_call.1} parent=5 // pred_region
        %s197 = ssub.s32 %s20, 1
        // Predicated region
        $region13: #{tpu_custom_call.1} parent=11 // pred_check
          %p198 = pneg %p53
        $region14: #{tpu_custom_call.1} parent=11 // pred_check_branch
          %200 = sbr.rel (%p198) target = $region16
        $region15: #{tpu_custom_call.1} parent=11 // pred_region
          _
        $region16: #{tpu_custom_call.1} parent=11 // pred_fallthru
          _
      $region12: #{tpu_custom_call.1} parent=5 // pred_fallthru
        _
      %p201 = scmp.lt.s32.totalorder %s20, 4
      // Predicated region
      $region17: #{tpu_custom_call.1} parent=5 // pred_check
        %p202 = pneg %p201
      $region18: #{tpu_custom_call.1} parent=5 // pred_check_branch
        %204 = sbr.rel (%p202) target = $region20
      $region19: #{tpu_custom_call.1} parent=5 // pred_region
        // Predicated region
        $region21: #{tpu_custom_call.1} parent=19 // pred_check
          %p205 = pneg %p73
        $region22: #{tpu_custom_call.1} parent=19 // pred_check_branch
          %207 = sbr.rel (%p205) target = $region24
        $region23: #{tpu_custom_call.1} parent=19 // pred_region
          %s208 = sand.u32 %s63, 1
          %s209 = scalar_lea.sflag [#allocation4], %s208
          %s210 = sand.u32 %s63, 1
          %s211 = smul.addr %s210, 128
          %s212 = scalar_lea.vmem [#allocation3], %s211
          %s214 = ssub.s32 2048, 2048
          %215 = vsyncadd %s209, %s214
          %s216 = smul.addr %s27, 16
          %s217 = smul.addr %s216, 128
          %s218 = scalar_lea.hbm %s1, %s217
          %s219 = sshll.u32 %s212, 4
          %s220 = int_to_ptr.vmem [resolvable:$true] %s219
          %225 = dma.hbm_to_vmem [thread:$0]  %s218, 2048, %s220, %s209, 128, 128, 8
        $region24: #{tpu_custom_call.1} parent=19 // pred_fallthru
          _
        // Predicated region
        $region25: #{tpu_custom_call.1} parent=19 // pred_check
          %p226 = pneg %p99
        $region26: #{tpu_custom_call.1} parent=19 // pred_check_branch
          %228 = sbr.rel (%p226) target = $region28
        $region27: #{tpu_custom_call.1} parent=19 // pred_region
          %s229 = sand.u32 %s20, 1
          %s230 = scalar_lea.sflag [#allocation7], %s229
          %s231 = sand.u32 %s89, 1
          %s232 = smul.addr %s231, 128
          %s233 = scalar_lea.vmem [#allocation6], %s232
          %s235 = ssub.s32 2048, 2048
          %236 = vsyncadd %s230, %s235
          %s237 = smul.addr %s27, 16
          %s238 = smul.addr %s237, 128
          %s239 = scalar_lea.hbm %s2, %s238
          %s240 = sshll.u32 %s233, 4
          %s241 = int_to_ptr.vmem [resolvable:$true] %s240
          %246 = dma.hbm_to_vmem [thread:$0]  %s239, 2048, %s241, %s230, 128, 128, 8
        $region28: #{tpu_custom_call.1} parent=19 // pred_fallthru
          _
        // Predicated region
        $region29: #{tpu_custom_call.1} parent=19 // pred_check
          %p247 = pneg %p125
        $region30: #{tpu_custom_call.1} parent=19 // pred_check_branch
          %249 = sbr.rel (%p247) target = $region32
        $region31: #{tpu_custom_call.1} parent=19 // pred_region
          %s250 = sand.u32 %s20, 1
          %s251 = scalar_lea.sflag [#allocation7], %s250
          %s252 = sand.u32 %s115, 1
          %s253 = smul.addr %s252, 128
          %s254 = scalar_lea.vmem [#allocation8], %s253
          %s256 = ssub.s32 2048, 2048
          %257 = vsyncadd %s251, %s256
          %s258 = smul.addr %s28, 16
          %s259 = smul.addr %s258, 128
          %s260 = scalar_lea.hbm %s3, %s259
          %s261 = sshll.u32 %s254, 4
          %s262 = int_to_ptr.vmem [resolvable:$true] %s261
          %267 = dma.hbm_to_vmem [thread:$0]  %s260, 2048, %s262, %s251, 128, 128, 8
        $region32: #{tpu_custom_call.1} parent=19 // pred_fallthru
          _
        // Predicated region
        $region33: #{tpu_custom_call.1} parent=19 // pred_check
          %p268 = pneg %p151
        $region34: #{tpu_custom_call.1} parent=19 // pred_check_branch
          %270 = sbr.rel (%p268) target = $region36
        $region35: #{tpu_custom_call.1} parent=19 // pred_region
          %p271 = scmp.lt.s32.totalorder %s28, 1
          %s272 = scalar_select %p271, %s28, 1
          %s273 = scalar_lea.vmem %s4, %s272
        $region36: #{tpu_custom_call.1} parent=19 // pred_fallthru
          _
      $region20: #{tpu_custom_call.1} parent=5 // pred_fallthru
        _
      %p274 = scmp.le.s32.totalorder 1, %s20
      %p275 = scmp.lt.s32.totalorder %s20, 5
      %p276 = pnand %p274, %p275
      %p277 = pneg %p276
      // Predicated region
      $region37: #{tpu_custom_call.1} parent=5 // pred_check
        _
      $region38: #{tpu_custom_call.1} parent=5 // pred_check_branch
        %279 = sbr.rel (%p276) target = $region40
      $region39: #{tpu_custom_call.1} parent=5 // pred_region
        %s280 = ssub.s32 %s20, 1
        %s281 = sand.u32 %s66, 1
        %s282 = scalar_lea.sflag [#allocation4], %s281
        %s283 = sand.u32 %s66, 1
        %s284 = smul.addr %s283, 128
        %s285 = scalar_lea.vmem [#allocation3], %s284
        // Predicated region
        $region41: #{tpu_custom_call.1} parent=39 // pred_check
          %p286 = pneg %p79
        $region42: #{tpu_custom_call.1} parent=39 // pred_check_branch
          %288 = sbr.rel (%p286) target = $region44
        $region43: #{tpu_custom_call.1} parent=39 // pred_region
          %289 = dma.done %s282, 2048
        $region44: #{tpu_custom_call.1} parent=39 // pred_fallthru
          _
        %s290 = sand.u32 %s25, 1
        %s291 = scalar_lea.sflag [#allocation7], %s290
        %s292 = sand.u32 %s92, 1
        %s293 = smul.addr %s292, 128
        %s294 = scalar_lea.vmem [#allocation6], %s293
        // Predicated region
        $region45: #{tpu_custom_call.1} parent=39 // pred_check
          %p295 = pneg %p105
        $region46: #{tpu_custom_call.1} parent=39 // pred_check_branch
          %297 = sbr.rel (%p295) target = $region48
        $region47: #{tpu_custom_call.1} parent=39 // pred_region
          %298 = dma.done %s291, 2048
        $region48: #{tpu_custom_call.1} parent=39 // pred_fallthru
          _
        %s299 = sand.u32 %s25, 1
        %s300 = scalar_lea.sflag [#allocation7], %s299
        %s301 = sand.u32 %s118, 1
        %s302 = smul.addr %s301, 128
        %s303 = scalar_lea.vmem [#allocation8], %s302
        // Predicated region
        $region49: #{tpu_custom_call.1} parent=39 // pred_check
          %p304 = pneg %p131
        $region50: #{tpu_custom_call.1} parent=39 // pred_check_branch
          %306 = sbr.rel (%p304) target = $region52
        $region51: #{tpu_custom_call.1} parent=39 // pred_region
          %307 = dma.done %s300, 2048
        $region52: #{tpu_custom_call.1} parent=39 // pred_fallthru
          _
        %p308 = pneg %p53
        %p309 = pneg %p50
        %s310 = sand.u32 %s66, 1
        %s311 = scalar_lea.sflag [#allocation4], %s310
        %s312 = sand.u32 %s66, 1
        %s313 = smul.addr %s312, 128
        %s314 = scalar_lea.vmem [#allocation3], %s313
        %p315 = pneg %p79
        %p316 = pneg %p76
        %s317 = sand.u32 %s25, 1
        %s318 = scalar_lea.sflag [#allocation7], %s317
        %s319 = sand.u32 %s92, 1
        %s320 = smul.addr %s319, 128
        %s321 = scalar_lea.vmem [#allocation6], %s320
        %p322 = pneg %p105
        %p323 = pneg %p102
        %s324 = sand.u32 %s25, 1
        %s325 = scalar_lea.sflag [#allocation7], %s324
        %s326 = sand.u32 %s118, 1
        %s327 = smul.addr %s326, 128
        %s328 = scalar_lea.vmem [#allocation8], %s327
        %p329 = pneg %p131
        %p330 = pneg %p128
        %p331 = scmp.lt.s32.totalorder %s30, 1
        %s332 = scalar_select %p331, %s30, 1
        %s333 = scalar_lea.vmem %s4, %s332
        %p334 = pneg %p157
        %p335 = pneg %p154
        %p336 = pneg %p183
        %p337 = pneg %p180
        %s338 = sand.u32 %s170, 1
        %s339 = scalar_lea.sflag [#allocation5], %s338
        %s340 = sand.u32 %s170, 1
        %s341 = smul.addr %s340, 128
        %s342 = scalar_lea.vmem [#allocation9], %s341
        %p343 = scmp.lt.s32.totalorder %s30, 1
        %s344 = scalar_select %p343, %s30, 1
        %s345 = scalar_lea.vmem %s4, %s344
        %p346 = scmp.eq.s32.totalorder %s30, 0
        // Predicated region
        $region53: #{tpu_custom_call.1} parent=39 // pred_check
          %p347 = pneg %p346
        $region54: #{tpu_custom_call.1} parent=39 // pred_check_branch
          %349 = sbr.rel (%p347) target = $region56
        $region55: #{tpu_custom_call.1} parent=39 // pred_region
          %v350 = vld [vmem:[%s294] sm:$0xff]
          %v351 = vld [vmem:[%s294 + $0x8] sm:$0xff]
          %v352 = vld [vmem:[%s294 + $0x10] sm:$0xff]
          %v353 = vld [vmem:[%s294 + $0x18] sm:$0xff]
          %v354 = vld [vmem:[%s294 + $0x20] sm:$0xff]
          %v355 = vld [vmem:[%s294 + $0x28] sm:$0xff]
          %v356 = vld [vmem:[%s294 + $0x30] sm:$0xff]
          %v357 = vld [vmem:[%s294 + $0x38] sm:$0xff]
          %v358 = vld [vmem:[%s294 + $0x40] sm:$0xff]
          %v359 = vld [vmem:[%s294 + $0x48] sm:$0xff]
          %v360 = vld [vmem:[%s294 + $0x50] sm:$0xff]
          %v361 = vld [vmem:[%s294 + $0x58] sm:$0xff]
          %v362 = vld [vmem:[%s294 + $0x60] sm:$0xff]
          %v363 = vld [vmem:[%s294 + $0x68] sm:$0xff]
          %v364 = vld [vmem:[%s294 + $0x70] sm:$0xff]
          %v365 = vld [vmem:[%s294 + $0x78] sm:$0xff]
          %366 = vst [vmem:[#allocation2] sm:$0xff] %v350
          %367 = vst [vmem:[#allocation2 + $0x8] sm:$0xff] %v351
          %368 = vst [vmem:[#allocation2 + $0x10] sm:$0xff] %v352
          %369 = vst [vmem:[#allocation2 + $0x18] sm:$0xff] %v353
          %370 = vst [vmem:[#allocation2 + $0x20] sm:$0xff] %v354
          %371 = vst [vmem:[#allocation2 + $0x28] sm:$0xff] %v355
          %372 = vst [vmem:[#allocation2 + $0x30] sm:$0xff] %v356
          %373 = vst [vmem:[#allocation2 + $0x38] sm:$0xff] %v357
          %374 = vst [vmem:[#allocation2 + $0x40] sm:$0xff] %v358
          %375 = vst [vmem:[#allocation2 + $0x48] sm:$0xff] %v359
          %376 = vst [vmem:[#allocation2 + $0x50] sm:$0xff] %v360
          %377 = vst [vmem:[#allocation2 + $0x58] sm:$0xff] %v361
          %378 = vst [vmem:[#allocation2 + $0x60] sm:$0xff] %v362
          %379 = vst [vmem:[#allocation2 + $0x68] sm:$0xff] %v363
          %380 = vst [vmem:[#allocation2 + $0x70] sm:$0xff] %v364
          %381 = vst [vmem:[#allocation2 + $0x78] sm:$0xff] %v365
        $region56: #{tpu_custom_call.1} parent=39 // pred_fallthru
          _
        %v382 = vld [vmem:[#allocation2] sm:$0xff]
        %v383 = vld [vmem:[#allocation2 + $0x8] sm:$0xff]
        %v384 = vld [vmem:[#allocation2 + $0x10] sm:$0xff]
        %v385 = vld [vmem:[#allocation2 + $0x18] sm:$0xff]
        %v386 = vld [vmem:[#allocation2 + $0x20] sm:$0xff]
        %v387 = vld [vmem:[#allocation2 + $0x28] sm:$0xff]
        %v388 = vld [vmem:[#allocation2 + $0x30] sm:$0xff]
        %v389 = vld [vmem:[#allocation2 + $0x38] sm:$0xff]
        %v390 = vld [vmem:[#allocation2 + $0x40] sm:$0xff]
        %v391 = vld [vmem:[#allocation2 + $0x48] sm:$0xff]
        %v392 = vld [vmem:[#allocation2 + $0x50] sm:$0xff]
        %v393 = vld [vmem:[#allocation2 + $0x58] sm:$0xff]
        %v394 = vld [vmem:[#allocation2 + $0x60] sm:$0xff]
        %v395 = vld [vmem:[#allocation2 + $0x68] sm:$0xff]
        %v396 = vld [vmem:[#allocation2 + $0x70] sm:$0xff]
        %v397 = vld [vmem:[#allocation2 + $0x78] sm:$0xff]
        %v398 = vld [vmem:[%s303] sm:$0xff]
        %v399 = vld [vmem:[%s303 + $0x8] sm:$0xff]
        %v400 = vld [vmem:[%s303 + $0x10] sm:$0xff]
        %v401 = vld [vmem:[%s303 + $0x18] sm:$0xff]
        %v402 = vld [vmem:[%s303 + $0x20] sm:$0xff]
        %v403 = vld [vmem:[%s303 + $0x28] sm:$0xff]
        %v404 = vld [vmem:[%s303 + $0x30] sm:$0xff]
        %v405 = vld [vmem:[%s303 + $0x38] sm:$0xff]
        %v406 = vld [vmem:[%s303 + $0x40] sm:$0xff]
        %v407 = vld [vmem:[%s303 + $0x48] sm:$0xff]
        %v408 = vld [vmem:[%s303 + $0x50] sm:$0xff]
        %v409 = vld [vmem:[%s303 + $0x58] sm:$0xff]
        %v410 = vld [vmem:[%s303 + $0x60] sm:$0xff]
        %v411 = vld [vmem:[%s303 + $0x68] sm:$0xff]
        %v412 = vld [vmem:[%s303 + $0x70] sm:$0xff]
        %v413 = vld [vmem:[%s303 + $0x78] sm:$0xff]
        %414 = vmatprep.subr.mxu0 0.0
        %415 = vmatpush1.msra.mxu0 %v398
        %416 = vmatprep.subr.mxu0 0.0
        %417 = vmatpush1.msra.mxu0 %v399
        %418 = vmatprep.subr.mxu0 0.0
        %419 = vmatpush1.msra.mxu0 %v400
        %420 = vmatprep.subr.mxu0 0.0
        %421 = vmatpush1.msra.mxu0 %v401
        %422 = vmatprep.subr.mxu0 0.0
        %423 = vmatpush1.msra.mxu0 %v402
        %424 = vmatprep.subr.mxu0 0.0
        %425 = vmatpush1.msra.mxu0 %v403
        %426 = vmatprep.subr.mxu0 0.0
        %427 = vmatpush1.msra.mxu0 %v404
        %428 = vmatprep.subr.mxu0 0.0
        %429 = vmatpush1.msra.mxu0 %v405
        %430 = vmatprep.subr.mxu0 0.0
        %431 = vmatpush1.msra.mxu0 %v406
        %432 = vmatprep.subr.mxu0 0.0
        %433 = vmatpush1.msra.mxu0 %v407
        %434 = vmatprep.subr.mxu0 0.0
        %435 = vmatpush1.msra.mxu0 %v408
        %436 = vmatprep.subr.mxu0 0.0
        %437 = vmatpush1.msra.mxu0 %v409
        %438 = vmatprep.subr.mxu0 0.0
        %439 = vmatpush1.msra.mxu0 %v410
        %440 = vmatprep.subr.mxu0 0.0
        %441 = vmatpush1.msra.mxu0 %v411
        %442 = vmatprep.subr.mxu0 0.0
        %443 = vmatpush1.msra.mxu0 %v412
        %444 = vmatprep.subr.mxu0 0.0
        %445 = vmatpush1.msra.mxu0 %v413
        %446 = vmatprep.subr.mxu0 0.0
        %447 = vmatpush1.msra.mxu0 0.0
        %448 = vmatprep.subr.mxu0 0.0
        %449 = vmatpush1.msra.mxu0 0.0
        %450 = vmatprep.subr.mxu0 0.0
        %451 = vmatpush1.msra.mxu0 0.0
        %452 = vmatprep.subr.mxu0 0.0
        %453 = vmatpush1.msra.mxu0 0.0
        %454 = vmatprep.subr.mxu0 0.0
        %455 = vmatpush1.msra.mxu0 0.0
        %456 = vmatprep.subr.mxu0 0.0
        %457 = vmatpush1.msra.mxu0 0.0
        %458 = vmatprep.subr.mxu0 0.0
        %459 = vmatpush1.msra.mxu0 0.0
        %460 = vmatprep.subr.mxu0 0.0
        %461 = vmatpush1.msra.mxu0 0.0
        %462 = vmatprep.subr.mxu0 0.0
        %463 = vmatpush1.msra.mxu0 0.0
        %464 = vmatprep.subr.mxu0 0.0
        %465 = vmatpush1.msra.mxu0 0.0
        %466 = vmatprep.subr.mxu0 0.0
        %467 = vmatpush1.msra.mxu0 0.0
        %468 = vmatprep.subr.mxu0 0.0
        %469 = vmatpush1.msra.mxu0 0.0
        %470 = vmatprep.subr.mxu0 0.0
        %471 = vmatpush1.msra.mxu0 0.0
        %472 = vmatprep.subr.mxu0 0.0
        %473 = vmatpush1.msra.mxu0 0.0
        %474 = vmatprep.subr.mxu0 0.0
        %475 = vmatpush1.msra.mxu0 0.0
        %476 = vmatprep.subr.mxu0 0.0
        %477 = vmatpush1.msra.mxu0 0.0
        %478 = vmatprep.mubr.f32.mxu0 0.0
        %479 = vmatmul.mubr.f32.gmra.mrb[0].mxu0 %v382
        %v480 = vpop.f32.mrb[0].mxu0
        %v481 = vadd.f32 0.0, %v480
        %v482 = vpop.f32.mrb[0].mxu0
        %483 = vmatprep.mubr.f32.mxu0 0.0
        %484 = vmatmul.mubr.f32.gmra.mrb[0].mxu0 %v383
        %v485 = vpop.f32.mrb[0].mxu0
        %v486 = vadd.f32 0.0, %v485
        %v487 = vpop.f32.mrb[0].mxu0
        %488 = vmatprep.mubr.f32.mxu0 0.0
        %489 = vmatmul.mubr.f32.gmra.mrb[0].mxu0 %v384
        %v490 = vpop.f32.mrb[0].mxu0
        %v491 = vadd.f32 0.0, %v490
        %v492 = vpop.f32.mrb[0].mxu0
        %493 = vmatprep.mubr.f32.mxu0 0.0
        %494 = vmatmul.mubr.f32.gmra.mrb[0].mxu0 %v385
        %v495 = vpop.f32.mrb[0].mxu0
        %v496 = vadd.f32 0.0, %v495
        %v497 = vpop.f32.mrb[0].mxu0
        %498 = vmatprep.mubr.f32.mxu0 0.0
        %499 = vmatmul.mubr.f32.gmra.mrb[0].mxu0 %v386
        %v500 = vpop.f32.mrb[0].mxu0
        %v501 = vadd.f32 0.0, %v500
        %v502 = vpop.f32.mrb[0].mxu0
        %503 = vmatprep.mubr.f32.mxu0 0.0
        %504 = vmatmul.mubr.f32.gmra.mrb[0].mxu0 %v387
        %v505 = vpop.f32.mrb[0].mxu0
        %v506 = vadd.f32 0.0, %v505
        %v507 = vpop.f32.mrb[0].mxu0
        %508 = vmatprep.mubr.f32.mxu0 0.0
        %509 = vmatmul.mubr.f32.gmra.mrb[0].mxu0 %v388
        %v510 = vpop.f32.mrb[0].mxu0
        %v511 = vadd.f32 0.0, %v510
        %v512 = vpop.f32.mrb[0].mxu0
        %513 = vmatprep.mubr.f32.mxu0 0.0
        %514 = vmatmul.mubr.f32.gmra.mrb[0].mxu0 %v389
        %v515 = vpop.f32.mrb[0].mxu0
        %v516 = vadd.f32 0.0, %v515
        %v517 = vpop.f32.mrb[0].mxu0
        %518 = vmatprep.mubr.f32.mxu0 0.0
        %519 = vmatmul.mubr.f32.gmra.mrb[0].mxu0 %v390
        %v520 = vpop.f32.mrb[0].mxu0
        %v521 = vadd.f32 0.0, %v520
        %v522 = vpop.f32.mrb[0].mxu0
        %523 = vmatprep.mubr.f32.mxu0 0.0
        %524 = vmatmul.mubr.f32.gmra.mrb[0].mxu0 %v391
        %v525 = vpop.f32.mrb[0].mxu0
        %v526 = vadd.f32 0.0, %v525
        %v527 = vpop.f32.mrb[0].mxu0
        %528 = vmatprep.mubr.f32.mxu0 0.0
        %529 = vmatmul.mubr.f32.gmra.mrb[0].mxu0 %v392
        %v530 = vpop.f32.mrb[0].mxu0
        %v531 = vadd.f32 0.0, %v530
        %v532 = vpop.f32.mrb[0].mxu0
        %533 = vmatprep.mubr.f32.mxu0 0.0
        %534 = vmatmul.mubr.f32.gmra.mrb[0].mxu0 %v393
        %v535 = vpop.f32.mrb[0].mxu0
        %v536 = vadd.f32 0.0, %v535
        %v537 = vpop.f32.mrb[0].mxu0
        %538 = vmatprep.mubr.f32.mxu0 0.0
        %539 = vmatmul.mubr.f32.gmra.mrb[0].mxu0 %v394
        %v540 = vpop.f32.mrb[0].mxu0
        %v541 = vadd.f32 0.0, %v540
        %v542 = vpop.f32.mrb[0].mxu0
        %543 = vmatprep.mubr.f32.mxu0 0.0
        %544 = vmatmul.mubr.f32.gmra.mrb[0].mxu0 %v395
        %v545 = vpop.f32.mrb[0].mxu0
        %v546 = vadd.f32 0.0, %v545
        %v547 = vpop.f32.mrb[0].mxu0
        %548 = vmatprep.mubr.f32.mxu0 0.0
        %549 = vmatmul.mubr.f32.gmra.mrb[0].mxu0 %v396
        %v550 = vpop.f32.mrb[0].mxu0
        %v551 = vadd.f32 0.0, %v550
        %v552 = vpop.f32.mrb[0].mxu0
        %553 = vmatprep.mubr.f32.mxu0 0.0
        %554 = vmatmul.mubr.f32.gmra.mrb[0].mxu0 %v397
        %v555 = vpop.f32.mrb[0].mxu0
        %v556 = vadd.f32 0.0, %v555
        %v557 = vpop.f32.mrb[0].mxu0
        %558 = vdwg.mxu0
        %v559 = vld [vmem:[%s0] sm:$0xff]
        %v560 = vld [vmem:[%s0 + $0x8] sm:$0xff]
        %v561 = vld [vmem:[%s0 + $0x10] sm:$0xff]
        %v562 = vld [vmem:[%s0 + $0x18] sm:$0xff]
        %v563 = vld [vmem:[%s0 + $0x20] sm:$0xff]
        %v564 = vld [vmem:[%s0 + $0x28] sm:$0xff]
        %v565 = vld [vmem:[%s0 + $0x30] sm:$0xff]
        %v566 = vld [vmem:[%s0 + $0x38] sm:$0xff]
        %v567 = vld [vmem:[%s0 + $0x40] sm:$0xff]
        %v568 = vld [vmem:[%s0 + $0x48] sm:$0xff]
        %v569 = vld [vmem:[%s0 + $0x50] sm:$0xff]
        %v570 = vld [vmem:[%s0 + $0x58] sm:$0xff]
        %v571 = vld [vmem:[%s0 + $0x60] sm:$0xff]
        %v572 = vld [vmem:[%s0 + $0x68] sm:$0xff]
        %v573 = vld [vmem:[%s0 + $0x70] sm:$0xff]
        %v574 = vld [vmem:[%s0 + $0x78] sm:$0xff]
        %576 = vset.pattern.permute.xlu0 0
        %577 = vperm.xlu0 %576, %v559
        %v578 = vpop.permute.xlu0 %577
        %581 = vset.pattern.permute.xlu0 0
        %582 = vperm.xlu0 %581, %v560
        %v583 = vpop.permute.xlu0 %582
        %586 = vset.pattern.permute.xlu0 0
        %587 = vperm.xlu0 %586, %v561
        %v588 = vpop.permute.xlu0 %587
        %591 = vset.pattern.permute.xlu0 0
        %592 = vperm.xlu0 %591, %v562
        %v593 = vpop.permute.xlu0 %592
        %596 = vset.pattern.permute.xlu0 0
        %597 = vperm.xlu0 %596, %v563
        %v598 = vpop.permute.xlu0 %597
        %601 = vset.pattern.permute.xlu0 0
        %602 = vperm.xlu0 %601, %v564
        %v603 = vpop.permute.xlu0 %602
        %606 = vset.pattern.permute.xlu0 0
        %607 = vperm.xlu0 %606, %v565
        %v608 = vpop.permute.xlu0 %607
        %611 = vset.pattern.permute.xlu0 0
        %612 = vperm.xlu0 %611, %v566
        %v613 = vpop.permute.xlu0 %612
        %616 = vset.pattern.permute.xlu0 0
        %617 = vperm.xlu0 %616, %v567
        %v618 = vpop.permute.xlu0 %617
        %621 = vset.pattern.permute.xlu0 0
        %622 = vperm.xlu0 %621, %v568
        %v623 = vpop.permute.xlu0 %622
        %626 = vset.pattern.permute.xlu0 0
        %627 = vperm.xlu0 %626, %v569
        %v628 = vpop.permute.xlu0 %627
        %631 = vset.pattern.permute.xlu0 0
        %632 = vperm.xlu0 %631, %v570
        %v633 = vpop.permute.xlu0 %632
        %636 = vset.pattern.permute.xlu0 0
        %637 = vperm.xlu0 %636, %v571
        %v638 = vpop.permute.xlu0 %637
        %641 = vset.pattern.permute.xlu0 0
        %642 = vperm.xlu0 %641, %v572
        %v643 = vpop.permute.xlu0 %642
        %646 = vset.pattern.permute.xlu0 0
        %647 = vperm.xlu0 %646, %v573
        %v648 = vpop.permute.xlu0 %647
        %651 = vset.pattern.permute.xlu0 0
        %652 = vperm.xlu0 %651, %v574
        %v653 = vpop.permute.xlu0 %652
        %v655 = vmul.f32 %v481, %v578
        %v656 = vmul.f32 %v486, %v583
        %v657 = vmul.f32 %v491, %v588
        %v658 = vmul.f32 %v496, %v593
        %v659 = vmul.f32 %v501, %v598
        %v660 = vmul.f32 %v506, %v603
        %v661 = vmul.f32 %v511, %v608
        %v662 = vmul.f32 %v516, %v613
        %v663 = vmul.f32 %v521, %v618
        %v664 = vmul.f32 %v526, %v623
        %v665 = vmul.f32 %v531, %v628
        %v666 = vmul.f32 %v536, %v633
        %v667 = vmul.f32 %v541, %v638
        %v668 = vmul.f32 %v546, %v643
        %v669 = vmul.f32 %v551, %v648
        %v670 = vmul.f32 %v556, %v653
        %v671 = vld [vmem:[%s285] sm:$0xff]
        %v672 = vld [vmem:[%s285 + $0x8] sm:$0xff]
        %v673 = vld [vmem:[%s285 + $0x10] sm:$0xff]
        %v674 = vld [vmem:[%s285 + $0x18] sm:$0xff]
        %v675 = vld [vmem:[%s285 + $0x20] sm:$0xff]
        %v676 = vld [vmem:[%s285 + $0x28] sm:$0xff]
        %v677 = vld [vmem:[%s285 + $0x30] sm:$0xff]
        %v678 = vld [vmem:[%s285 + $0x38] sm:$0xff]
        %v679 = vld [vmem:[%s285 + $0x40] sm:$0xff]
        %v680 = vld [vmem:[%s285 + $0x48] sm:$0xff]
        %v681 = vld [vmem:[%s285 + $0x50] sm:$0xff]
        %v682 = vld [vmem:[%s285 + $0x58] sm:$0xff]
        %v683 = vld [vmem:[%s285 + $0x60] sm:$0xff]
        %v684 = vld [vmem:[%s285 + $0x68] sm:$0xff]
        %v685 = vld [vmem:[%s285 + $0x70] sm:$0xff]
        %v686 = vld [vmem:[%s285 + $0x78] sm:$0xff]
        %v687 = vld [vmem:[%s345] sm:$0x1]
        %v689 = vlaneseq
        %v690 = vshrl.u32 %v689, 7
        %v691 = vsub.s32 0, %v690
        %v692 = vrot.slane %v687, %v691
        %694 = vmatprep.subr.mxu0 0.0
        %695 = vmatpush1.msra.mxu0 %v655
        %696 = vmatprep.subr.mxu0 0.0
        %697 = vmatpush1.msra.mxu0 %v656
        %698 = vmatprep.subr.mxu0 0.0
        %699 = vmatpush1.msra.mxu0 %v657
        %700 = vmatprep.subr.mxu0 0.0
        %701 = vmatpush1.msra.mxu0 %v658
        %702 = vmatprep.subr.mxu0 0.0
        %703 = vmatpush1.msra.mxu0 %v659
        %704 = vmatprep.subr.mxu0 0.0
        %705 = vmatpush1.msra.mxu0 %v660
        %706 = vmatprep.subr.mxu0 0.0
        %707 = vmatpush1.msra.mxu0 %v661
        %708 = vmatprep.subr.mxu0 0.0
        %709 = vmatpush1.msra.mxu0 %v662
        %710 = vmatprep.subr.mxu0 0.0
        %711 = vmatpush1.msra.mxu0 %v663
        %712 = vmatprep.subr.mxu0 0.0
        %713 = vmatpush1.msra.mxu0 %v664
        %714 = vmatprep.subr.mxu0 0.0
        %715 = vmatpush1.msra.mxu0 %v665
        %716 = vmatprep.subr.mxu0 0.0
        %717 = vmatpush1.msra.mxu0 %v666
        %718 = vmatprep.subr.mxu0 0.0
        %719 = vmatpush1.msra.mxu0 %v667
        %720 = vmatprep.subr.mxu0 0.0
        %721 = vmatpush1.msra.mxu0 %v668
        %722 = vmatprep.subr.mxu0 0.0
        %723 = vmatpush1.msra.mxu0 %v669
        %724 = vmatprep.subr.mxu0 0.0
        %725 = vmatpush1.msra.mxu0 %v670
        %726 = vmatprep.subr.mxu0 0.0
        %727 = vmatpush1.msra.mxu0 0.0
        %728 = vmatprep.subr.mxu0 0.0
        %729 = vmatpush1.msra.mxu0 0.0
        %730 = vmatprep.subr.mxu0 0.0
        %731 = vmatpush1.msra.mxu0 0.0
        %732 = vmatprep.subr.mxu0 0.0
        %733 = vmatpush1.msra.mxu0 0.0
        %734 = vmatprep.subr.mxu0 0.0
        %735 = vmatpush1.msra.mxu0 0.0
        %736 = vmatprep.subr.mxu0 0.0
        %737 = vmatpush1.msra.mxu0 0.0
        %738 = vmatprep.subr.mxu0 0.0
        %739 = vmatpush1.msra.mxu0 0.0
        %740 = vmatprep.subr.mxu0 0.0
        %741 = vmatpush1.msra.mxu0 0.0
        %742 = vmatprep.subr.mxu0 0.0
        %743 = vmatpush1.msra.mxu0 0.0
        %744 = vmatprep.subr.mxu0 0.0
        %745 = vmatpush1.msra.mxu0 0.0
        %746 = vmatprep.subr.mxu0 0.0
        %747 = vmatpush1.msra.mxu0 0.0
        %748 = vmatprep.subr.mxu0 0.0
        %749 = vmatpush1.msra.mxu0 0.0
        %750 = vmatprep.subr.mxu0 0.0
        %751 = vmatpush1.msra.mxu0 0.0
        %752 = vmatprep.subr.mxu0 0.0
        %753 = vmatpush1.msra.mxu0 0.0
        %754 = vmatprep.subr.mxu0 0.0
        %755 = vmatpush1.msra.mxu0 0.0
        %756 = vmatprep.subr.mxu0 0.0
        %757 = vmatpush1.msra.mxu0 0.0
        %758 = vmatprep.mubr.f32.mxu0 0.0
        %759 = vmatmul.mubr.f32.gmra.mrb[0].mxu0 %v671
        %v760 = vpop.f32.mrb[0].mxu0
        %v761 = vadd.f32 %v692, %v760
        %v762 = vpop.f32.mrb[0].mxu0
        %763 = vmatprep.mubr.f32.mxu0 0.0
        %764 = vmatmul.mubr.f32.gmra.mrb[0].mxu0 %v672
        %v765 = vpop.f32.mrb[0].mxu0
        %v766 = vadd.f32 %v692, %v765
        %v767 = vpop.f32.mrb[0].mxu0
        %768 = vmatprep.mubr.f32.mxu0 0.0
        %769 = vmatmul.mubr.f32.gmra.mrb[0].mxu0 %v673
        %v770 = vpop.f32.mrb[0].mxu0
        %v771 = vadd.f32 %v692, %v770
        %v772 = vpop.f32.mrb[0].mxu0
        %773 = vmatprep.mubr.f32.mxu0 0.0
        %774 = vmatmul.mubr.f32.gmra.mrb[0].mxu0 %v674
        %v775 = vpop.f32.mrb[0].mxu0
        %v776 = vadd.f32 %v692, %v775
        %v777 = vpop.f32.mrb[0].mxu0
        %778 = vmatprep.mubr.f32.mxu0 0.0
        %779 = vmatmul.mubr.f32.gmra.mrb[0].mxu0 %v675
        %v780 = vpop.f32.mrb[0].mxu0
        %v781 = vadd.f32 %v692, %v780
        %v782 = vpop.f32.mrb[0].mxu0
        %783 = vmatprep.mubr.f32.mxu0 0.0
        %784 = vmatmul.mubr.f32.gmra.mrb[0].mxu0 %v676
        %v785 = vpop.f32.mrb[0].mxu0
        %v786 = vadd.f32 %v692, %v785
        %v787 = vpop.f32.mrb[0].mxu0
        %788 = vmatprep.mubr.f32.mxu0 0.0
        %789 = vmatmul.mubr.f32.gmra.mrb[0].mxu0 %v677
        %v790 = vpop.f32.mrb[0].mxu0
        %v791 = vadd.f32 %v692, %v790
        %v792 = vpop.f32.mrb[0].mxu0
        %793 = vmatprep.mubr.f32.mxu0 0.0
        %794 = vmatmul.mubr.f32.gmra.mrb[0].mxu0 %v678
        %v795 = vpop.f32.mrb[0].mxu0
        %v796 = vadd.f32 %v692, %v795
        %v797 = vpop.f32.mrb[0].mxu0
        %798 = vmatprep.mubr.f32.mxu0 0.0
        %799 = vmatmul.mubr.f32.gmra.mrb[0].mxu0 %v679
        %v800 = vpop.f32.mrb[0].mxu0
        %v801 = vadd.f32 %v692, %v800
        %v802 = vpop.f32.mrb[0].mxu0
        %803 = vmatprep.mubr.f32.mxu0 0.0
        %804 = vmatmul.mubr.f32.gmra.mrb[0].mxu0 %v680
        %v805 = vpop.f32.mrb[0].mxu0
        %v806 = vadd.f32 %v692, %v805
        %v807 = vpop.f32.mrb[0].mxu0
        %808 = vmatprep.mubr.f32.mxu0 0.0
        %809 = vmatmul.mubr.f32.gmra.mrb[0].mxu0 %v681
        %v810 = vpop.f32.mrb[0].mxu0
        %v811 = vadd.f32 %v692, %v810
        %v812 = vpop.f32.mrb[0].mxu0
        %813 = vmatprep.mubr.f32.mxu0 0.0
        %814 = vmatmul.mubr.f32.gmra.mrb[0].mxu0 %v682
        %v815 = vpop.f32.mrb[0].mxu0
        %v816 = vadd.f32 %v692, %v815
        %v817 = vpop.f32.mrb[0].mxu0
        %818 = vmatprep.mubr.f32.mxu0 0.0
        %819 = vmatmul.mubr.f32.gmra.mrb[0].mxu0 %v683
        %v820 = vpop.f32.mrb[0].mxu0
        %v821 = vadd.f32 %v692, %v820
        %v822 = vpop.f32.mrb[0].mxu0
        %823 = vmatprep.mubr.f32.mxu0 0.0
        %824 = vmatmul.mubr.f32.gmra.mrb[0].mxu0 %v684
        %v825 = vpop.f32.mrb[0].mxu0
        %v826 = vadd.f32 %v692, %v825
        %v827 = vpop.f32.mrb[0].mxu0
        %828 = vmatprep.mubr.f32.mxu0 0.0
        %829 = vmatmul.mubr.f32.gmra.mrb[0].mxu0 %v685
        %v830 = vpop.f32.mrb[0].mxu0
        %v831 = vadd.f32 %v692, %v830
        %v832 = vpop.f32.mrb[0].mxu0
        %833 = vmatprep.mubr.f32.mxu0 0.0
        %834 = vmatmul.mubr.f32.gmra.mrb[0].mxu0 %v686
        %v835 = vpop.f32.mrb[0].mxu0
        %v836 = vadd.f32 %v692, %v835
        %v837 = vpop.f32.mrb[0].mxu0
        %838 = vdwg.mxu0
        %v839 = vmax.f32 %v761, 0.0
        %v840 = vmax.f32 %v766, 0.0
        %v841 = vmax.f32 %v771, 0.0
        %v842 = vmax.f32 %v776, 0.0
        %v843 = vmax.f32 %v781, 0.0
        %v844 = vmax.f32 %v786, 0.0
        %v845 = vmax.f32 %v791, 0.0
        %v846 = vmax.f32 %v796, 0.0
        %v847 = vmax.f32 %v801, 0.0
        %v848 = vmax.f32 %v806, 0.0
        %v849 = vmax.f32 %v811, 0.0
        %v850 = vmax.f32 %v816, 0.0
        %v851 = vmax.f32 %v821, 0.0
        %v852 = vmax.f32 %v826, 0.0
        %v853 = vmax.f32 %v831, 0.0
        %v854 = vmax.f32 %v836, 0.0
        %855 = vst [vmem:[#allocation2] sm:$0xff] %v839
        %856 = vst [vmem:[#allocation2 + $0x8] sm:$0xff] %v840
        %857 = vst [vmem:[#allocation2 + $0x10] sm:$0xff] %v841
        %858 = vst [vmem:[#allocation2 + $0x18] sm:$0xff] %v842
        %859 = vst [vmem:[#allocation2 + $0x20] sm:$0xff] %v843
        %860 = vst [vmem:[#allocation2 + $0x28] sm:$0xff] %v844
        %861 = vst [vmem:[#allocation2 + $0x30] sm:$0xff] %v845
        %862 = vst [vmem:[#allocation2 + $0x38] sm:$0xff] %v846
        %863 = vst [vmem:[#allocation2 + $0x40] sm:$0xff] %v847
        %864 = vst [vmem:[#allocation2 + $0x48] sm:$0xff] %v848
        %865 = vst [vmem:[#allocation2 + $0x50] sm:$0xff] %v849
        %866 = vst [vmem:[#allocation2 + $0x58] sm:$0xff] %v850
        %867 = vst [vmem:[#allocation2 + $0x60] sm:$0xff] %v851
        %868 = vst [vmem:[#allocation2 + $0x68] sm:$0xff] %v852
        %869 = vst [vmem:[#allocation2 + $0x70] sm:$0xff] %v853
        %870 = vst [vmem:[#allocation2 + $0x78] sm:$0xff] %v854
        %p871 = scmp.eq.s32.totalorder %s30, 1
        // Predicated region
        $region57: #{tpu_custom_call.1} parent=39 // pred_check
          %p872 = pneg %p871
        $region58: #{tpu_custom_call.1} parent=39 // pred_check_branch
          %874 = sbr.rel (%p872) target = $region60
        $region59: #{tpu_custom_call.1} parent=39 // pred_region
          %875 = vst [vmem:[%s342] sm:$0xff] %v839
          %876 = vst [vmem:[%s342 + $0x8] sm:$0xff] %v840
          %877 = vst [vmem:[%s342 + $0x10] sm:$0xff] %v841
          %878 = vst [vmem:[%s342 + $0x18] sm:$0xff] %v842
          %879 = vst [vmem:[%s342 + $0x20] sm:$0xff] %v843
          %880 = vst [vmem:[%s342 + $0x28] sm:$0xff] %v844
          %881 = vst [vmem:[%s342 + $0x30] sm:$0xff] %v845
          %882 = vst [vmem:[%s342 + $0x38] sm:$0xff] %v846
          %883 = vst [vmem:[%s342 + $0x40] sm:$0xff] %v847
          %884 = vst [vmem:[%s342 + $0x48] sm:$0xff] %v848
          %885 = vst [vmem:[%s342 + $0x50] sm:$0xff] %v849
          %886 = vst [vmem:[%s342 + $0x58] sm:$0xff] %v850
          %887 = vst [vmem:[%s342 + $0x60] sm:$0xff] %v851
          %888 = vst [vmem:[%s342 + $0x68] sm:$0xff] %v852
          %889 = vst [vmem:[%s342 + $0x70] sm:$0xff] %v853
          %890 = vst [vmem:[%s342 + $0x78] sm:$0xff] %v854
        $region60: #{tpu_custom_call.1} parent=39 // pred_fallthru
          _
        %s891 = sand.u32 %s170, 1
        %s892 = scalar_lea.sflag [#allocation5], %s891
        %s893 = sand.u32 %s170, 1
        %s894 = smul.addr %s893, 128
        %s895 = scalar_lea.vmem [#allocation9], %s894
        // Predicated region
        $region61: #{tpu_custom_call.1} parent=39 // pred_check
          %p896 = pneg %p180
        $region62: #{tpu_custom_call.1} parent=39 // pred_check_branch
          %898 = sbr.rel (%p896) target = $region64
        $region63: #{tpu_custom_call.1} parent=39 // pred_region
          %s900 = ssub.s32 2048, 2048
          %901 = vsyncadd %s892, %s900
          %s902 = smul.addr %s29, 16
          %s903 = smul.addr %s902, 128
          %s904 = scalar_lea.hbm %s5, %s903
          %s905 = sshll.u32 %s895, 4
          %s906 = int_to_ptr.vmem [resolvable:$true] %s905
          %911 = dma.vmem_to_hbm [thread:$0]  %s906, 2048, %s904, %s892, 128, 128, 8
        $region64: #{tpu_custom_call.1} parent=39 // pred_fallthru
          _
      $region40: #{tpu_custom_call.1} parent=5 // pred_fallthru
        _
      %p912 = scmp.le.s32.totalorder 2, %s20
      // Predicated region
      $region65: #{tpu_custom_call.1} parent=5 // pred_check
        %p913 = pneg %p912
      $region66: #{tpu_custom_call.1} parent=5 // pred_check_branch
        %915 = sbr.rel (%p913) target = $region68
      $region67: #{tpu_custom_call.1} parent=5 // pred_region
        %s916 = ssub.s32 %s20, 2
        // Predicated region
        $region69: #{tpu_custom_call.1} parent=67 // pred_check
          %p917 = pneg %p186
        $region70: #{tpu_custom_call.1} parent=67 // pred_check_branch
          %919 = sbr.rel (%p917) target = $region72
        $region71: #{tpu_custom_call.1} parent=67 // pred_region
          %s920 = sand.u32 %s171, 1
          %s921 = scalar_lea.sflag [#allocation5], %s920
          %s922 = sand.u32 %s171, 1
          %s923 = smul.addr %s922, 128
          %s924 = scalar_lea.vmem [#allocation9], %s923
          %925 = dma.done %s921, 2048
        $region72: #{tpu_custom_call.1} parent=67 // pred_fallthru
          _
      $region68: #{tpu_custom_call.1} parent=5 // pred_fallthru
        _
    $region6: #{tpu_custom_call.1} parent=1 // loop_footer
      %s24 = sadd.s32 1, %s20
    $region7: #{tpu_custom_call.1} parent=1 // loop_footer_branch
      %19 = sbr.rel target = $region3
    $region8: #{tpu_custom_call.1} parent=1 // loop_exit
      _
    %926 = vsyncpa [#allocation4], 1
    %s927 = scalar_lea.sflag [#allocation4], 1
    %928 = vsyncpa %s927, 1
    %929 = vsyncpa [#allocation7], 1
    %s930 = scalar_lea.sflag [#allocation7], 1
    %931 = vsyncpa %s930, 1
    %932 = vsyncpa [#allocation5], 1
    %s933 = scalar_lea.sflag [#allocation5], 1
    %934 = vsyncpa %s933, 1

// kernel: tpu_custom_call.1
$region0: #{tpu_custom_call.1}
  #allocation0 [shape = 'u32[]', space=smem, size = 0x4, offset = 0x4, fixed_abs, tag = 'smem constant byte address 0x4 - core index']
  #allocation1 [shape = 'u32[144,128]{1,0:T(1,128)}', space=vmem, size = 0x12000, scoped, tag = 'internal scratch']
  #allocation2 [shape = 'f32[1,128,128]{2,1,0:T(8,128)}', space=vmem, size = 0x10000, scoped, tag = 'scratch operand']
  %s0 = inlined_call_operand.vmem [shape: f32[128,1], index: 0, kind: input, shape index: {}]
  %s1 = inlined_call_operand.hbm [shape: f32[2,128,128], index: 1, kind: input, shape index: {}]
  %s2 = inlined_call_operand.hbm [shape: f32[2,128,128], index: 2, kind: input, shape index: {}]
  %s3 = inlined_call_operand.hbm [shape: f32[2,128,128], index: 3, kind: input, shape index: {}]
  %s4 = inlined_call_operand.vmem [shape: f32[2,1,128], index: 4, kind: input, shape index: {}]
  %s5 = inlined_call_operand.hbm [shape: f32[2,128,128], index: 5, kind: output, shape index: {}]
  %s6 = sld [smem:[#allocation0]]
  $region73: #{tpu_custom_call.1} parent=0
    _
  %s8 = ssub.s32 1, %s6
  %s9 = scalar_select 0, %s8, %s6
  $region1: #{tpu_custom_call.1} parent=0
    #allocation3 [shape = 'u8[131072]{0}', space=vmem, size = 0x20000, scoped, tag = 'input window, operand 1']
    #allocation4 [shape = 's32[2]{0}', space=sflag, size = 0x8, scoped, tag = 'scoped memory for tpu_custom_call.1']
    #allocation5 [shape = 's32[2]{0}', space=sflag, size = 0x8, scoped, tag = 'scoped memory for tpu_custom_call.1']
    #allocation6 [shape = 'u8[131072]{0}', space=vmem, size = 0x20000, scoped, tag = 'input window, operand 2']
    #allocation7 [shape = 's32[2]{0}', space=sflag, size = 0x8, scoped, tag = 'scoped memory for tpu_custom_call.1']
    #allocation8 [shape = 'u8[131072]{0}', space=vmem, size = 0x20000, scoped, tag = 'input window, operand 3']
    #allocation9 [shape = 'u8[131072]{0}', space=vmem, size = 0x20000, scoped, tag = 'output window, operand 0']
    %10 = vsyncpa [#allocation4], 0
    %s11 = scalar_lea.sflag [#allocation4], 1
    %12 = vsyncpa %s11, 0
    %13 = vsyncpa [#allocation7], 0
    %s14 = scalar_lea.sflag [#allocation7], 1
    %15 = vsyncpa %s14, 0
    %16 = vsyncpa [#allocation5], 0
    %s17 = scalar_lea.sflag [#allocation5], 1
    %18 = vsyncpa %s17, 0
    loop: start=0, step=1, limit=6
    $region2: #{tpu_custom_call.1} parent=1 // loop_pre_header
      _
    $region3: #{tpu_custom_call.1} parent=1 // loop_header
      %s20 = sphi 0, %s24
      %p21 = scmp.ge.s32.totalorder %s20, 6
      %s27 = sphi 0, %s39
      %s28 = sphi 0, %s35
      %s29 = sphi 0, %s27
      %s30 = sphi 0, %s28
      %s31 = sphi 0, %s29
      %s32 = sphi 0, %s30
      %s40 = sphi 0, %s40
      %s42 = sphi 0, %s40
      %s43 = sphi 0, %s42
      %s57 = sphi 0, %s43
      %s63 = sphi 0, %s65
      %s66 = sphi 0, %s63
      %s67 = sphi 0, %s66
      %s83 = sphi 0, %s67
      %s89 = sphi 0, %s91
      %s92 = sphi 0, %s89
      %s93 = sphi 0, %s92
      %s109 = sphi 0, %s93
      %s115 = sphi 0, %s117
      %s118 = sphi 0, %s115
      %s119 = sphi 0, %s118
      %s135 = sphi 0, %s119
      %s141 = sphi 0, %s143
      %s144 = sphi 0, %s141
      %s145 = sphi 0, %s144
      %s161 = sphi 0, %s145
      %s167 = sphi 0, %s169
      %s170 = sphi 0, %s167
      %s171 = sphi 0, %s170
      %s187 = sphi 0, %s171
    $region4: #{tpu_custom_call.1} parent=1 // loop_header_branch
      %23 = sbr.rel (%p21) target = $region8
    $region5: #{tpu_custom_call.1} parent=1 // loop_body
      %s25 = ssub.s32 %s20, 1
      %s26 = ssub.s32 %s20, 2
      %s33 = sadd.s32 1, %s28
      %p34 = scmp.ge.s32.totalorder %s33, 2
      %s35 = scalar_select %p34, 0, %s33
      %s36 = sadd.s32 1, %s27
      %s37 = scalar_select %p34, %s36, %s27
      %p38 = scmp.ge.s32.totalorder %s37, 2
      %s39 = scalar_select %p38, 0, %s37
      %s41 = sadd.s32 %s40, 1
      %p44 = scmp.eq.s32.totalorder %s20, 3
      %p45 = scmp.ne.s32.totalorder %s40, %s42
      %p46 = scmp.eq.s32.totalorder %s20, 0
      %p47 = por %p45, %p46
      %p48 = scmp.ne.s32.totalorder %s40, %s42
      %p49 = scmp.eq.s32.totalorder %s25, 3
      %p50 = por %p48, %p49
      %p51 = scmp.ne.s32.totalorder %s42, %s43
      %p52 = scmp.eq.s32.totalorder %s25, 0
      %p53 = por %p51, %p52
      %p54 = scmp.ne.s32.totalorder %s42, %s43
      %p55 = scmp.eq.s32.totalorder %s26, 3
      %p56 = por %p54, %p55
      %p58 = scmp.ne.s32.totalorder %s43, %s57
      %p59 = scmp.eq.s32.totalorder %s26, 0
      %p60 = por %p58, %p59
      %s61 = ssub.s32 %s27, %s39
      %p62 = scmp.eq.s32.totalorder %s61, 0
      %s64 = sadd.s32 %s63, 1
      %s65 = scalar_select %p62, %s63, %s64
      %p68 = pneg %p62
      %p69 = scmp.eq.s32.totalorder %s20, 3
      %p70 = por %p68, %p69
      %p71 = scmp.ne.s32.totalorder %s63, %s66
      %p72 = scmp.eq.s32.totalorder %s20, 0
      %p73 = por %p71, %p72
      %p74 = scmp.ne.s32.totalorder %s63, %s66
      %p75 = scmp.eq.s32.totalorder %s25, 3
      %p76 = por %p74, %p75
      %p77 = scmp.ne.s32.totalorder %s66, %s67
      %p78 = scmp.eq.s32.totalorder %s25, 0
      %p79 = por %p77, %p78
      %p80 = scmp.ne.s32.totalorder %s66, %s67
      %p81 = scmp.eq.s32.totalorder %s26, 3
      %p82 = por %p80, %p81
      %p84 = scmp.ne.s32.totalorder %s67, %s83
      %p85 = scmp.eq.s32.totalorder %s26, 0
      %p86 = por %p84, %p85
      %s87 = ssub.s32 %s27, %s39
      %p88 = scmp.eq.s32.totalorder %s87, 0
      %s90 = sadd.s32 %s89, 1
      %s91 = scalar_select %p88, %s89, %s90
      %p94 = pneg %p88
      %p95 = scmp.eq.s32.totalorder %s20, 3
      %p96 = por %p94, %p95
      %p97 = scmp.ne.s32.totalorder %s89, %s92
      %p98 = scmp.eq.s32.totalorder %s20, 0
      %p99 = por %p97, %p98
      %p100 = scmp.ne.s32.totalorder %s89, %s92
      %p101 = scmp.eq.s32.totalorder %s25, 3
      %p102 = por %p100, %p101
      %p103 = scmp.ne.s32.totalorder %s92, %s93
      %p104 = scmp.eq.s32.totalorder %s25, 0
      %p105 = por %p103, %p104
      %p106 = scmp.ne.s32.totalorder %s92, %s93
      %p107 = scmp.eq.s32.totalorder %s26, 3
      %p108 = por %p106, %p107
      %p110 = scmp.ne.s32.totalorder %s93, %s109
      %p111 = scmp.eq.s32.totalorder %s26, 0
      %p112 = por %p110, %p111
      %s113 = ssub.s32 %s28, %s35
      %p114 = scmp.eq.s32.totalorder %s113, 0
      %s116 = sadd.s32 %s115, 1
      %s117 = scalar_select %p114, %s115, %s116
      %p120 = pneg %p114
      %p121 = scmp.eq.s32.totalorder %s20, 3
      %p122 = por %p120, %p121
      %p123 = scmp.ne.s32.totalorder %s115, %s118
      %p124 = scmp.eq.s32.totalorder %s20, 0
      %p125 = por %p123, %p124
      %p126 = scmp.ne.s32.totalorder %s115, %s118
      %p127 = scmp.eq.s32.totalorder %s25, 3
      %p128 = por %p126, %p127
      %p129 = scmp.ne.s32.totalorder %s118, %s119
      %p130 = scmp.eq.s32.totalorder %s25, 0
      %p131 = por %p129, %p130
      %p132 = scmp.ne.s32.totalorder %s118, %s119
      %p133 = scmp.eq.s32.totalorder %s26, 3
      %p134 = por %p132, %p133
      %p136 = scmp.ne.s32.totalorder %s119, %s135
      %p137 = scmp.eq.s32.totalorder %s26, 0
      %p138 = por %p136, %p137
      %s139 = ssub.s32 %s28, %s35
      %p140 = scmp.eq.s32.totalorder %s139, 0
      %s142 = sadd.s32 %s141, 1
      %s143 = scalar_select %p140, %s141, %s142
      %p146 = pneg %p140
      %p147 = scmp.eq.s32.totalorder %s20, 3
      %p148 = por %p146, %p147
      %p149 = scmp.ne.s32.totalorder %s141, %s144
      %p150 = scmp.eq.s32.totalorder %s20, 0
      %p151 = por %p149, %p150
      %p152 = scmp.ne.s32.totalorder %s141, %s144
      %p153 = scmp.eq.s32.totalorder %s25, 3
      %p154 = por %p152, %p153
      %p155 = scmp.ne.s32.totalorder %s144, %s145
      %p156 = scmp.eq.s32.totalorder %s25, 0
      %p157 = por %p155, %p156
      %p158 = scmp.ne.s32.totalorder %s144, %s145
      %p159 = scmp.eq.s32.totalorder %s26, 3
      %p160 = por %p158, %p159
      %p162 = scmp.ne.s32.totalorder %s145, %s161
      %p163 = scmp.eq.s32.totalorder %s26, 0
      %p164 = por %p162, %p163
      %s165 = ssub.s32 %s27, %s39
      %p166 = scmp.eq.s32.totalorder %s165, 0
      %s168 = sadd.s32 %s167, 1
      %s169 = scalar_select %p166, %s167, %s168
      %p172 = pneg %p166
      %p173 = scmp.eq.s32.totalorder %s20, 3
      %p174 = por %p172, %p173
      %p175 = scmp.ne.s32.totalorder %s167, %s170
      %p176 = scmp.eq.s32.totalorder %s20, 0
      %p177 = por %p175, %p176
      %p178 = scmp.ne.s32.totalorder %s167, %s170
      %p179 = scmp.eq.s32.totalorder %s25, 3
      %p180 = por %p178, %p179
      %p181 = scmp.ne.s32.totalorder %s170, %s171
      %p182 = scmp.eq.s32.totalorder %s25, 0
      %p183 = por %p181, %p182
      %p184 = scmp.ne.s32.totalorder %s170, %s171
      %p185 = scmp.eq.s32.totalorder %s26, 3
      %p186 = por %p184, %p185
      %p188 = scmp.ne.s32.totalorder %s171, %s187
      %p189 = scmp.eq.s32.totalorder %s26, 0
      %p190 = por %p188, %p189
      %p191 = scmp.le.s32.totalorder 1, %s20
      %p192 = scmp.lt.s32.totalorder %s20, 5
      %p193 = pnand %p191, %p192
      %p194 = pneg %p193
      // Predicated region
      $region9: #{tpu_custom_call.1} parent=5 // pred_check
        _
      $region10: #{tpu_custom_call.1} parent=5 // pred_check_branch
        %196 = sbr.rel (%p193) target = $region12
      $region11: #{tpu_custom_call.1} parent=5 // pred_region
        %s197 = ssub.s32 %s20, 1
        // Predicated region
        $region13: #{tpu_custom_call.1} parent=11 // pred_check
          %p198 = pneg %p53
        $region14: #{tpu_custom_call.1} parent=11 // pred_check_branch
          %200 = sbr.rel (%p198) target = $region16
        $region15: #{tpu_custom_call.1} parent=11 // pred_region
          _
        $region16: #{tpu_custom_call.1} parent=11 // pred_fallthru
          _
      $region12: #{tpu_custom_call.1} parent=5 // pred_fallthru
        _
      %p201 = scmp.lt.s32.totalorder %s20, 4
      // Predicated region
      $region17: #{tpu_custom_call.1} parent=5 // pred_check
        %p202 = pneg %p201
      $region18: #{tpu_custom_call.1} parent=5 // pred_check_branch
        %204 = sbr.rel (%p202) target = $region20
      $region19: #{tpu_custom_call.1} parent=5 // pred_region
        // Predicated region
        $region21: #{tpu_custom_call.1} parent=19 // pred_check
          %p205 = pneg %p73
        $region22: #{tpu_custom_call.1} parent=19 // pred_check_branch
          %207 = sbr.rel (%p205) target = $region24
        $region23: #{tpu_custom_call.1} parent=19 // pred_region
          %s208 = sand.u32 %s63, 1
          %s209 = scalar_lea.sflag [#allocation4], %s208
          %s210 = sand.u32 %s63, 1
          %s211 = smul.addr %s210, 128
          %s212 = scalar_lea.vmem [#allocation3], %s211
          %s214 = ssub.s32 2048, 2048
          %215 = vsyncadd %s209, %s214
          %s216 = smul.addr %s27, 16
          %s217 = smul.addr %s216, 128
          %s218 = scalar_lea.hbm %s1, %s217
          %s219 = sshll.u32 %s212, 4
          %s220 = int_to_ptr.vmem [resolvable:$true] %s219
          %225 = dma.hbm_to_vmem [thread:$0]  %s218, 2048, %s220, %s209, 128, 128, 8
        $region24: #{tpu_custom_call.1} parent=19 // pred_fallthru
          _
        // Predicated region
        $region25: #{tpu_custom_call.1} parent=19 // pred_check
          %p226 = pneg %p99
        $region26: #{tpu_custom_call.1} parent=19 // pred_check_branch
          %228 = sbr.rel (%p226) target = $region28
        $region27: #{tpu_custom_call.1} parent=19 // pred_region
          %s229 = sand.u32 %s20, 1
          %s230 = scalar_lea.sflag [#allocation7], %s229
          %s231 = sand.u32 %s89, 1
          %s232 = smul.addr %s231, 128
          %s233 = scalar_lea.vmem [#allocation6], %s232
          %s235 = ssub.s32 2048, 2048
          %236 = vsyncadd %s230, %s235
          %s237 = smul.addr %s27, 16
          %s238 = smul.addr %s237, 128
          %s239 = scalar_lea.hbm %s2, %s238
          %s240 = sshll.u32 %s233, 4
          %s241 = int_to_ptr.vmem [resolvable:$true] %s240
          %246 = dma.hbm_to_vmem [thread:$0]  %s239, 2048, %s241, %s230, 128, 128, 8
        $region28: #{tpu_custom_call.1} parent=19 // pred_fallthru
          _
        // Predicated region
        $region29: #{tpu_custom_call.1} parent=19 // pred_check
          %p247 = pneg %p125
        $region30: #{tpu_custom_call.1} parent=19 // pred_check_branch
          %249 = sbr.rel (%p247) target = $region32
        $region31: #{tpu_custom_call.1} parent=19 // pred_region
          %s250 = sand.u32 %s20, 1
          %s251 = scalar_lea.sflag [#allocation7], %s250
          %s252 = sand.u32 %s115, 1
          %s253 = smul.addr %s252, 128
          %s254 = scalar_lea.vmem [#allocation8], %s253
          %s256 = ssub.s32 2048, 2048
          %257 = vsyncadd %s251, %s256
          %s258 = smul.addr %s28, 16
          %s259 = smul.addr %s258, 128
          %s260 = scalar_lea.hbm %s3, %s259
          %s261 = sshll.u32 %s254, 4
          %s262 = int_to_ptr.vmem [resolvable:$true] %s261
          %267 = dma.hbm_to_vmem [thread:$0]  %s260, 2048, %s262, %s251, 128, 128, 8
        $region32: #{tpu_custom_call.1} parent=19 // pred_fallthru
          _
        // Predicated region
        $region33: #{tpu_custom_call.1} parent=19 // pred_check
          %p268 = pneg %p151
        $region34: #{tpu_custom_call.1} parent=19 // pred_check_branch
          %270 = sbr.rel (%p268) target = $region36
        $region35: #{tpu_custom_call.1} parent=19 // pred_region
          %p271 = scmp.lt.s32.totalorder %s28, 1
          %s272 = scalar_select %p271, %s28, 1
          %s273 = scalar_lea.vmem %s4, %s272
        $region36: #{tpu_custom_call.1} parent=19 // pred_fallthru
          _
      $region20: #{tpu_custom_call.1} parent=5 // pred_fallthru
        _
      %p274 = scmp.le.s32.totalorder 1, %s20
      %p275 = scmp.lt.s32.totalorder %s20, 5
      %p276 = pnand %p274, %p275
      %p277 = pneg %p276
      // Predicated region
      $region37: #{tpu_custom_call.1} parent=5 // pred_check
        _
      $region38: #{tpu_custom_call.1} parent=5 // pred_check_branch
        %279 = sbr.rel (%p276) target = $region40
      $region39: #{tpu_custom_call.1} parent=5 // pred_region
        %s280 = ssub.s32 %s20, 1
        %s281 = sand.u32 %s66, 1
        %s282 = scalar_lea.sflag [#allocation4], %s281
        %s283 = sand.u32 %s66, 1
        %s284 = smul.addr %s283, 128
        %s285 = scalar_lea.vmem [#allocation3], %s284
        // Predicated region
        $region41: #{tpu_custom_call.1} parent=39 // pred_check
          %p286 = pneg %p79
        $region42: #{tpu_custom_call.1} parent=39 // pred_check_branch
          %288 = sbr.rel (%p286) target = $region44
        $region43: #{tpu_custom_call.1} parent=39 // pred_region
          %289 = dma.done %s282, 2048
        $region44: #{tpu_custom_call.1} parent=39 // pred_fallthru
          _
        %s290 = sand.u32 %s25, 1
        %s291 = scalar_lea.sflag [#allocation7], %s290
        %s292 = sand.u32 %s92, 1
        %s293 = smul.addr %s292, 128
        %s294 = scalar_lea.vmem [#allocation6], %s293
        // Predicated region
        $region45: #{tpu_custom_call.1} parent=39 // pred_check
          %p295 = pneg %p105
        $region46: #{tpu_custom_call.1} parent=39 // pred_check_branch
          %297 = sbr.rel (%p295) target = $region48
        $region47: #{tpu_custom_call.1} parent=39 // pred_region
          %298 = dma.done %s291, 2048
        $region48: #{tpu_custom_call.1} parent=39 // pred_fallthru
          _
        %s299 = sand.u32 %s25, 1
        %s300 = scalar_lea.sflag [#allocation7], %s299
        %s301 = sand.u32 %s118, 1
        %s302 = smul.addr %s301, 128
        %s303 = scalar_lea.vmem [#allocation8], %s302
        // Predicated region
        $region49: #{tpu_custom_call.1} parent=39 // pred_check
          %p304 = pneg %p131
        $region50: #{tpu_custom_call.1} parent=39 // pred_check_branch
          %306 = sbr.rel (%p304) target = $region52
        $region51: #{tpu_custom_call.1} parent=39 // pred_region
          %307 = dma.done %s300, 2048
        $region52: #{tpu_custom_call.1} parent=39 // pred_fallthru
          _
        %p308 = pneg %p53
        %p309 = pneg %p50
        %s310 = sand.u32 %s66, 1
        %s311 = scalar_lea.sflag [#allocation4], %s310
        %s312 = sand.u32 %s66, 1
        %s313 = smul.addr %s312, 128
        %s314 = scalar_lea.vmem [#allocation3], %s313
        %p315 = pneg %p79
        %p316 = pneg %p76
        %s317 = sand.u32 %s25, 1
        %s318 = scalar_lea.sflag [#allocation7], %s317
        %s319 = sand.u32 %s92, 1
        %s320 = smul.addr %s319, 128
        %s321 = scalar_lea.vmem [#allocation6], %s320
        %p322 = pneg %p105
        %p323 = pneg %p102
        %s324 = sand.u32 %s25, 1
        %s325 = scalar_lea.sflag [#allocation7], %s324
        %s326 = sand.u32 %s118, 1
        %s327 = smul.addr %s326, 128
        %s328 = scalar_lea.vmem [#allocation8], %s327
        %p329 = pneg %p131
        %p330 = pneg %p128
        %p331 = scmp.lt.s32.totalorder %s30, 1
        %s332 = scalar_select %p331, %s30, 1
        %s333 = scalar_lea.vmem %s4, %s332
        %p334 = pneg %p157
        %p335 = pneg %p154
        %p336 = pneg %p183
        %p337 = pneg %p180
        %s338 = sand.u32 %s170, 1
        %s339 = scalar_lea.sflag [#allocation5], %s338
        %s340 = sand.u32 %s170, 1
        %s341 = smul.addr %s340, 128
        %s342 = scalar_lea.vmem [#allocation9], %s341
        %p343 = scmp.lt.s32.totalorder %s30, 1
        %s344 = scalar_select %p343, %s30, 1
        %s345 = scalar_lea.vmem %s4, %s344
        %p346 = scmp.eq.s32.totalorder %s30, 0
        // Predicated region
        $region53: #{tpu_custom_call.1} parent=39 // pred_check
          %p347 = pneg %p346
        $region54: #{tpu_custom_call.1} parent=39 // pred_check_branch
          %349 = sbr.rel (%p347) target = $region56
        $region55: #{tpu_custom_call.1} parent=39 // pred_region
          %v350 = vld [vmem:[%s294] sm:$0xff]
          %v351 = vld [vmem:[%s294 + $0x8] sm:$0xff]
          %v352 = vld [vmem:[%s294 + $0x10] sm:$0xff]
          %v353 = vld [vmem:[%s294 + $0x18] sm:$0xff]
          %v354 = vld [vmem:[%s294 + $0x20] sm:$0xff]
          %v355 = vld [vmem:[%s294 + $0x28] sm:$0xff]
          %v356 = vld [vmem:[%s294 + $0x30] sm:$0xff]
          %v357 = vld [vmem:[%s294 + $0x38] sm:$0xff]
          %v358 = vld [vmem:[%s294 + $0x40] sm:$0xff]
          %v359 = vld [vmem:[%s294 + $0x48] sm:$0xff]
          %v360 = vld [vmem:[%s294 + $0x50] sm:$0xff]
          %v361 = vld [vmem:[%s294 + $0x58] sm:$0xff]
          %v362 = vld [vmem:[%s294 + $0x60] sm:$0xff]
          %v363 = vld [vmem:[%s294 + $0x68] sm:$0xff]
          %v364 = vld [vmem:[%s294 + $0x70] sm:$0xff]
          %v365 = vld [vmem:[%s294 + $0x78] sm:$0xff]
          %366 = vst [vmem:[#allocation2] sm:$0xff] %v350
          %367 = vst [vmem:[#allocation2 + $0x8] sm:$0xff] %v351
          %368 = vst [vmem:[#allocation2 + $0x10] sm:$0xff] %v352
          %369 = vst [vmem:[#allocation2 + $0x18] sm:$0xff] %v353
          %370 = vst [vmem:[#allocation2 + $0x20] sm:$0xff] %v354
          %371 = vst [vmem:[#allocation2 + $0x28] sm:$0xff] %v355
          %372 = vst [vmem:[#allocation2 + $0x30] sm:$0xff] %v356
          %373 = vst [vmem:[#allocation2 + $0x38] sm:$0xff] %v357
          %374 = vst [vmem:[#allocation2 + $0x40] sm:$0xff] %v358
          %375 = vst [vmem:[#allocation2 + $0x48] sm:$0xff] %v359
          %376 = vst [vmem:[#allocation2 + $0x50] sm:$0xff] %v360
          %377 = vst [vmem:[#allocation2 + $0x58] sm:$0xff] %v361
          %378 = vst [vmem:[#allocation2 + $0x60] sm:$0xff] %v362
          %379 = vst [vmem:[#allocation2 + $0x68] sm:$0xff] %v363
          %380 = vst [vmem:[#allocation2 + $0x70] sm:$0xff] %v364
          %381 = vst [vmem:[#allocation2 + $0x78] sm:$0xff] %v365
        $region56: #{tpu_custom_call.1} parent=39 // pred_fallthru
          _
        %v382 = vld [vmem:[#allocation2] sm:$0xff]
        %v383 = vld [vmem:[#allocation2 + $0x8] sm:$0xff]
        %v384 = vld [vmem:[#allocation2 + $0x10] sm:$0xff]
        %v385 = vld [vmem:[#allocation2 + $0x18] sm:$0xff]
        %v386 = vld [vmem:[#allocation2 + $0x20] sm:$0xff]
        %v387 = vld [vmem:[#allocation2 + $0x28] sm:$0xff]
        %v388 = vld [vmem:[#allocation2 + $0x30] sm:$0xff]
        %v389 = vld [vmem:[#allocation2 + $0x38] sm:$0xff]
        %v390 = vld [vmem:[#allocation2 + $0x40] sm:$0xff]
        %v391 = vld [vmem:[#allocation2 + $0x48] sm:$0xff]
        %v392 = vld [vmem:[#allocation2 + $0x50] sm:$0xff]
        %v393 = vld [vmem:[#allocation2 + $0x58] sm:$0xff]
        %v394 = vld [vmem:[#allocation2 + $0x60] sm:$0xff]
        %v395 = vld [vmem:[#allocation2 + $0x68] sm:$0xff]
        %v396 = vld [vmem:[#allocation2 + $0x70] sm:$0xff]
        %v397 = vld [vmem:[#allocation2 + $0x78] sm:$0xff]
        %v398 = vld [vmem:[%s303] sm:$0xff]
        %v399 = vld [vmem:[%s303 + $0x8] sm:$0xff]
        %v400 = vld [vmem:[%s303 + $0x10] sm:$0xff]
        %v401 = vld [vmem:[%s303 + $0x18] sm:$0xff]
        %v402 = vld [vmem:[%s303 + $0x20] sm:$0xff]
        %v403 = vld [vmem:[%s303 + $0x28] sm:$0xff]
        %v404 = vld [vmem:[%s303 + $0x30] sm:$0xff]
        %v405 = vld [vmem:[%s303 + $0x38] sm:$0xff]
        %v406 = vld [vmem:[%s303 + $0x40] sm:$0xff]
        %v407 = vld [vmem:[%s303 + $0x48] sm:$0xff]
        %v408 = vld [vmem:[%s303 + $0x50] sm:$0xff]
        %v409 = vld [vmem:[%s303 + $0x58] sm:$0xff]
        %v410 = vld [vmem:[%s303 + $0x60] sm:$0xff]
        %v411 = vld [vmem:[%s303 + $0x68] sm:$0xff]
        %v412 = vld [vmem:[%s303 + $0x70] sm:$0xff]
        %v413 = vld [vmem:[%s303 + $0x78] sm:$0xff]
        %414 = vmatprep.subr.mxu0 0.0
        %415 = vmatpush1.msra.mxu0 %v398
        %416 = vmatprep.subr.mxu0 0.0
        %417 = vmatpush1.msra.mxu0 %v399
        %418 = vmatprep.subr.mxu0 0.0
        %419 = vmatpush1.msra.mxu0 %v400
        %420 = vmatprep.subr.mxu0 0.0
        %421 = vmatpush1.msra.mxu0 %v401
        %422 = vmatprep.subr.mxu0 0.0
        %423 = vmatpush1.msra.mxu0 %v402
        %424 = vmatprep.subr.mxu0 0.0
        %425 = vmatpush1.msra.mxu0 %v403
        %426 = vmatprep.subr.mxu0 0.0
        %427 = vmatpush1.msra.mxu0 %v404
        %428 = vmatprep.subr.mxu0 0.0
        %429 = vmatpush1.msra.mxu0 %v405
        %430 = vmatprep.subr.mxu0 0.0
        %431 = vmatpush1.msra.mxu0 %v406
        %432 = vmatprep.subr.mxu0 0.0
        %433 = vmatpush1.msra.mxu0 %v407
        %434 = vmatprep.subr.mxu0 0.0
        %435 = vmatpush1.msra.mxu0 %v408
        %436 = vmatprep.subr.mxu0 0.0
        %437 = vmatpush1.msra.mxu0 %v409
        %438 = vmatprep.subr.mxu0 0.0
        %439 = vmatpush1.msra.mxu0 %v410
        %440 = vmatprep.subr.mxu0 0.0
        %441 = vmatpush1.msra.mxu0 %v411
        %442 = vmatprep.subr.mxu0 0.0
        %443 = vmatpush1.msra.mxu0 %v412
        %444 = vmatprep.subr.mxu0 0.0
        %445 = vmatpush1.msra.mxu0 %v413
        %446 = vmatprep.subr.mxu0 0.0
        %447 = vmatpush1.msra.mxu0 0.0
        %448 = vmatprep.subr.mxu0 0.0
        %449 = vmatpush1.msra.mxu0 0.0
        %450 = vmatprep.subr.mxu0 0.0
        %451 = vmatpush1.msra.mxu0 0.0
        %452 = vmatprep.subr.mxu0 0.0
        %453 = vmatpush1.msra.mxu0 0.0
        %454 = vmatprep.subr.mxu0 0.0
        %455 = vmatpush1.msra.mxu0 0.0
        %456 = vmatprep.subr.mxu0 0.0
        %457 = vmatpush1.msra.mxu0 0.0
        %458 = vmatprep.subr.mxu0 0.0
        %459 = vmatpush1.msra.mxu0 0.0
        %460 = vmatprep.subr.mxu0 0.0
        %461 = vmatpush1.msra.mxu0 0.0
        %462 = vmatprep.subr.mxu0 0.0
        %463 = vmatpush1.msra.mxu0 0.0
        %464 = vmatprep.subr.mxu0 0.0
        %465 = vmatpush1.msra.mxu0 0.0
        %466 = vmatprep.subr.mxu0 0.0
        %467 = vmatpush1.msra.mxu0 0.0
        %468 = vmatprep.subr.mxu0 0.0
        %469 = vmatpush1.msra.mxu0 0.0
        %470 = vmatprep.subr.mxu0 0.0
        %471 = vmatpush1.msra.mxu0 0.0
        %472 = vmatprep.subr.mxu0 0.0
        %473 = vmatpush1.msra.mxu0 0.0
        %474 = vmatprep.subr.mxu0 0.0
        %475 = vmatpush1.msra.mxu0 0.0
        %476 = vmatprep.subr.mxu0 0.0
        %477 = vmatpush1.msra.mxu0 0.0
        %478 = vmatprep.mubr.f32.mxu0 0.0
        %479 = vmatmul.mubr.f32.gmra.mrb[0].mxu0 %v382
        %v480 = vpop.f32.mrb[0].mxu0
        %v481 = vadd.f32 0.0, %v480
        %v482 = vpop.f32.mrb[0].mxu0
        %483 = vmatprep.mubr.f32.mxu0 0.0
        %484 = vmatmul.mubr.f32.gmra.mrb[0].mxu0 %v383
        %v485 = vpop.f32.mrb[0].mxu0
        %v486 = vadd.f32 0.0, %v485
        %v487 = vpop.f32.mrb[0].mxu0
        %488 = vmatprep.mubr.f32.mxu0 0.0
        %489 = vmatmul.mubr.f32.gmra.mrb[0].mxu0 %v384
        %v490 = vpop.f32.mrb[0].mxu0
        %v491 = vadd.f32 0.0, %v490
        %v492 = vpop.f32.mrb[0].mxu0
        %493 = vmatprep.mubr.f32.mxu0 0.0
        %494 = vmatmul.mubr.f32.gmra.mrb[0].mxu0 %v385
        %v495 = vpop.f32.mrb[0].mxu0
        %v496 = vadd.f32 0.0, %v495
        %v497 = vpop.f32.mrb[0].mxu0
        %498 = vmatprep.mubr.f32.mxu0 0.0
        %499 = vmatmul.mubr.f32.gmra.mrb[0].mxu0 %v386
        %v500 = vpop.f32.mrb[0].mxu0
        %v501 = vadd.f32 0.0, %v500
        %v502 = vpop.f32.mrb[0].mxu0
        %503 = vmatprep.mubr.f32.mxu0 0.0
        %504 = vmatmul.mubr.f32.gmra.mrb[0].mxu0 %v387
        %v505 = vpop.f32.mrb[0].mxu0
        %v506 = vadd.f32 0.0, %v505
        %v507 = vpop.f32.mrb[0].mxu0
        %508 = vmatprep.mubr.f32.mxu0 0.0
        %509 = vmatmul.mubr.f32.gmra.mrb[0].mxu0 %v388
        %v510 = vpop.f32.mrb[0].mxu0
        %v511 = vadd.f32 0.0, %v510
        %v512 = vpop.f32.mrb[0].mxu0
        %513 = vmatprep.mubr.f32.mxu0 0.0
        %514 = vmatmul.mubr.f32.gmra.mrb[0].mxu0 %v389
        %v515 = vpop.f32.mrb[0].mxu0
        %v516 = vadd.f32 0.0, %v515
        %v517 = vpop.f32.mrb[0].mxu0
        %518 = vmatprep.mubr.f32.mxu0 0.0
        %519 = vmatmul.mubr.f32.gmra.mrb[0].mxu0 %v390
        %v520 = vpop.f32.mrb[0].mxu0
        %v521 = vadd.f32 0.0, %v520
        %v522 = vpop.f32.mrb[0].mxu0
        %523 = vmatprep.mubr.f32.mxu0 0.0
        %524 = vmatmul.mubr.f32.gmra.mrb[0].mxu0 %v391
        %v525 = vpop.f32.mrb[0].mxu0
        %v526 = vadd.f32 0.0, %v525
        %v527 = vpop.f32.mrb[0].mxu0
        %528 = vmatprep.mubr.f32.mxu0 0.0
        %529 = vmatmul.mubr.f32.gmra.mrb[0].mxu0 %v392
        %v530 = vpop.f32.mrb[0].mxu0
        %v531 = vadd.f32 0.0, %v530
        %v532 = vpop.f32.mrb[0].mxu0
        %533 = vmatprep.mubr.f32.mxu0 0.0
        %534 = vmatmul.mubr.f32.gmra.mrb[0].mxu0 %v393
        %v535 = vpop.f32.mrb[0].mxu0
        %v536 = vadd.f32 0.0, %v535
        %v537 = vpop.f32.mrb[0].mxu0
        %538 = vmatprep.mubr.f32.mxu0 0.0
        %539 = vmatmul.mubr.f32.gmra.mrb[0].mxu0 %v394
        %v540 = vpop.f32.mrb[0].mxu0
        %v541 = vadd.f32 0.0, %v540
        %v542 = vpop.f32.mrb[0].mxu0
        %543 = vmatprep.mubr.f32.mxu0 0.0
        %544 = vmatmul.mubr.f32.gmra.mrb[0].mxu0 %v395
        %v545 = vpop.f32.mrb[0].mxu0
        %v546 = vadd.f32 0.0, %v545
        %v547 = vpop.f32.mrb[0].mxu0
        %548 = vmatprep.mubr.f32.mxu0 0.0
        %549 = vmatmul.mubr.f32.gmra.mrb[0].mxu0 %v396
        %v550 = vpop.f32.mrb[0].mxu0
        %v551 = vadd.f32 0.0, %v550
        %v552 = vpop.f32.mrb[0].mxu0
        %553 = vmatprep.mubr.f32.mxu0 0.0
        %554 = vmatmul.mubr.f32.gmra.mrb[0].mxu0 %v397
        %v555 = vpop.f32.mrb[0].mxu0
        %v556 = vadd.f32 0.0, %v555
        %v557 = vpop.f32.mrb[0].mxu0
        %558 = vdwg.mxu0
        %v559 = vld [vmem:[%s0] sm:$0xff]
        %v560 = vld [vmem:[%s0 + $0x8] sm:$0xff]
        %v561 = vld [vmem:[%s0 + $0x10] sm:$0xff]
        %v562 = vld [vmem:[%s0 + $0x18] sm:$0xff]
        %v563 = vld [vmem:[%s0 + $0x20] sm:$0xff]
        %v564 = vld [vmem:[%s0 + $0x28] sm:$0xff]
        %v565 = vld [vmem:[%s0 + $0x30] sm:$0xff]
        %v566 = vld [vmem:[%s0 + $0x38] sm:$0xff]
        %v567 = vld [vmem:[%s0 + $0x40] sm:$0xff]
        %v568 = vld [vmem:[%s0 + $0x48] sm:$0xff]
        %v569 = vld [vmem:[%s0 + $0x50] sm:$0xff]
        %v570 = vld [vmem:[%s0 + $0x58] sm:$0xff]
        %v571 = vld [vmem:[%s0 + $0x60] sm:$0xff]
        %v572 = vld [vmem:[%s0 + $0x68] sm:$0xff]
        %v573 = vld [vmem:[%s0 + $0x70] sm:$0xff]
        %v574 = vld [vmem:[%s0 + $0x78] sm:$0xff]
        %576 = vset.pattern.permute.xlu0 0
        %577 = vperm.xlu0 %576, %v559
        %v578 = vpop.permute.xlu0 %577
        %581 = vset.pattern.permute.xlu0 0
        %582 = vperm.xlu0 %581, %v560
        %v583 = vpop.permute.xlu0 %582
        %586 = vset.pattern.permute.xlu0 0
        %587 = vperm.xlu0 %586, %v561
        %v588 = vpop.permute.xlu0 %587
        %591 = vset.pattern.permute.xlu0 0
        %592 = vperm.xlu0 %591, %v562
        %v593 = vpop.permute.xlu0 %592
        %596 = vset.pattern.permute.xlu0 0
        %597 = vperm.xlu0 %596, %v563
        %v598 = vpop.permute.xlu0 %597
        %601 = vset.pattern.permute.xlu0 0
        %602 = vperm.xlu0 %601, %v564
        %v603 = vpop.permute.xlu0 %602
        %606 = vset.pattern.permute.xlu0 0
        %607 = vperm.xlu0 %606, %v565
        %v608 = vpop.permute.xlu0 %607
        %611 = vset.pattern.permute.xlu0 0
        %612 = vperm.xlu0 %611, %v566
        %v613 = vpop.permute.xlu0 %612
        %616 = vset.pattern.permute.xlu0 0
        %617 = vperm.xlu0 %616, %v567
        %v618 = vpop.permute.xlu0 %617
        %621 = vset.pattern.permute.xlu0 0
        %622 = vperm.xlu0 %621, %v568
        %v623 = vpop.permute.xlu0 %622
        %626 = vset.pattern.permute.xlu0 0
        %627 = vperm.xlu0 %626, %v569
        %v628 = vpop.permute.xlu0 %627
        %631 = vset.pattern.permute.xlu0 0
        %632 = vperm.xlu0 %631, %v570
        %v633 = vpop.permute.xlu0 %632
        %636 = vset.pattern.permute.xlu0 0
        %637 = vperm.xlu0 %636, %v571
        %v638 = vpop.permute.xlu0 %637
        %641 = vset.pattern.permute.xlu0 0
        %642 = vperm.xlu0 %641, %v572
        %v643 = vpop.permute.xlu0 %642
        %646 = vset.pattern.permute.xlu0 0
        %647 = vperm.xlu0 %646, %v573
        %v648 = vpop.permute.xlu0 %647
        %651 = vset.pattern.permute.xlu0 0
        %652 = vperm.xlu0 %651, %v574
        %v653 = vpop.permute.xlu0 %652
        %v655 = vmul.f32 %v481, %v578
        %v656 = vmul.f32 %v486, %v583
        %v657 = vmul.f32 %v491, %v588
        %v658 = vmul.f32 %v496, %v593
        %v659 = vmul.f32 %v501, %v598
        %v660 = vmul.f32 %v506, %v603
        %v661 = vmul.f32 %v511, %v608
        %v662 = vmul.f32 %v516, %v613
        %v663 = vmul.f32 %v521, %v618
        %v664 = vmul.f32 %v526, %v623
        %v665 = vmul.f32 %v531, %v628
        %v666 = vmul.f32 %v536, %v633
        %v667 = vmul.f32 %v541, %v638
        %v668 = vmul.f32 %v546, %v643
        %v669 = vmul.f32 %v551, %v648
        %v670 = vmul.f32 %v556, %v653
        %v671 = vld [vmem:[%s285] sm:$0xff]
        %v672 = vld [vmem:[%s285 + $0x8] sm:$0xff]
        %v673 = vld [vmem:[%s285 + $0x10] sm:$0xff]
        %v674 = vld [vmem:[%s285 + $0x18] sm:$0xff]
        %v675 = vld [vmem:[%s285 + $0x20] sm:$0xff]
        %v676 = vld [vmem:[%s285 + $0x28] sm:$0xff]
        %v677 = vld [vmem:[%s285 + $0x30] sm:$0xff]
        %v678 = vld [vmem:[%s285 + $0x38] sm:$0xff]
        %v679 = vld [vmem:[%s285 + $0x40] sm:$0xff]
        %v680 = vld [vmem:[%s285 + $0x48] sm:$0xff]
        %v681 = vld [vmem:[%s285 + $0x50] sm:$0xff]
        %v682 = vld [vmem:[%s285 + $0x58] sm:$0xff]
        %v683 = vld [vmem:[%s285 + $0x60] sm:$0xff]
        %v684 = vld [vmem:[%s285 + $0x68] sm:$0xff]
        %v685 = vld [vmem:[%s285 + $0x70] sm:$0xff]
        %v686 = vld [vmem:[%s285 + $0x78] sm:$0xff]
        %v687 = vld [vmem:[%s345] sm:$0x1]
        %v689 = vlaneseq
        %v690 = vshrl.u32 %v689, 7
        %v691 = vsub.s32 0, %v690
        %v692 = vrot.slane %v687, %v691
        %694 = vmatprep.subr.mxu0 0.0
        %695 = vmatpush1.msra.mxu0 %v655
        %696 = vmatprep.subr.mxu0 0.0
        %697 = vmatpush1.msra.mxu0 %v656
        %698 = vmatprep.subr.mxu0 0.0
        %699 = vmatpush1.msra.mxu0 %v657
        %700 = vmatprep.subr.mxu0 0.0
        %701 = vmatpush1.msra.mxu0 %v658
        %702 = vmatprep.subr.mxu0 0.0
        %703 = vmatpush1.msra.mxu0 %v659
        %704 = vmatprep.subr.mxu0 0.0
        %705 = vmatpush1.msra.mxu0 %v660
        %706 = vmatprep.subr.mxu0 0.0
        %707 = vmatpush1.msra.mxu0 %v661
        %708 = vmatprep.subr.mxu0 0.0
        %709 = vmatpush1.msra.mxu0 %v662
        %710 = vmatprep.subr.mxu0 0.0
        %711 = vmatpush1.msra.mxu0 %v663
        %712 = vmatprep.subr.mxu0 0.0
        %713 = vmatpush1.msra.mxu0 %v664
        %714 = vmatprep.subr.mxu0 0.0
        %715 = vmatpush1.msra.mxu0 %v665
        %716 = vmatprep.subr.mxu0 0.0
        %717 = vmatpush1.msra.mxu0 %v666
        %718 = vmatprep.subr.mxu0 0.0
        %719 = vmatpush1.msra.mxu0 %v667
        %720 = vmatprep.subr.mxu0 0.0
        %721 = vmatpush1.msra.mxu0 %v668
        %722 = vmatprep.subr.mxu0 0.0
        %723 = vmatpush1.msra.mxu0 %v669
        %724 = vmatprep.subr.mxu0 0.0
        %725 = vmatpush1.msra.mxu0 %v670
        %726 = vmatprep.subr.mxu0 0.0
        %727 = vmatpush1.msra.mxu0 0.0
        %728 = vmatprep.subr.mxu0 0.0
        %729 = vmatpush1.msra.mxu0 0.0
        %730 = vmatprep.subr.mxu0 0.0
        %731 = vmatpush1.msra.mxu0 0.0
        %732 = vmatprep.subr.mxu0 0.0
        %733 = vmatpush1.msra.mxu0 0.0
        %734 = vmatprep.subr.mxu0 0.0
        %735 = vmatpush1.msra.mxu0 0.0
        %736 = vmatprep.subr.mxu0 0.0
        %737 = vmatpush1.msra.mxu0 0.0
        %738 = vmatprep.subr.mxu0 0.0
        %739 = vmatpush1.msra.mxu0 0.0
        %740 = vmatprep.subr.mxu0 0.0
        %741 = vmatpush1.msra.mxu0 0.0
        %742 = vmatprep.subr.mxu0 0.0
        %743 = vmatpush1.msra.mxu0 0.0
        %744 = vmatprep.subr.mxu0 0.0
        %745 = vmatpush1.msra.mxu0 0.0
        %746 = vmatprep.subr.mxu0 0.0
        %747 = vmatpush1.msra.mxu0 0.0
        %748 = vmatprep.subr.mxu0 0.0
        %749 = vmatpush1.msra.mxu0 0.0
        %750 = vmatprep.subr.mxu0 0.0
        %751 = vmatpush1.msra.mxu0 0.0
        %752 = vmatprep.subr.mxu0 0.0
        %753 = vmatpush1.msra.mxu0 0.0
        %754 = vmatprep.subr.mxu0 0.0
        %755 = vmatpush1.msra.mxu0 0.0
        %756 = vmatprep.subr.mxu0 0.0
        %757 = vmatpush1.msra.mxu0 0.0
        %758 = vmatprep.mubr.f32.mxu0 0.0
        %759 = vmatmul.mubr.f32.gmra.mrb[0].mxu0 %v671
        %v760 = vpop.f32.mrb[0].mxu0
        %v761 = vadd.f32 %v692, %v760
        %v762 = vpop.f32.mrb[0].mxu0
        %763 = vmatprep.mubr.f32.mxu0 0.0
        %764 = vmatmul.mubr.f32.gmra.mrb[0].mxu0 %v672
        %v765 = vpop.f32.mrb[0].mxu0
        %v766 = vadd.f32 %v692, %v765
        %v767 = vpop.f32.mrb[0].mxu0
        %768 = vmatprep.mubr.f32.mxu0 0.0
        %769 = vmatmul.mubr.f32.gmra.mrb[0].mxu0 %v673
        %v770 = vpop.f32.mrb[0].mxu0
        %v771 = vadd.f32 %v692, %v770
        %v772 = vpop.f32.mrb[0].mxu0
        %773 = vmatprep.mubr.f32.mxu0 0.0
        %774 = vmatmul.mubr.f32.gmra.mrb[0].mxu0 %v674
        %v775 = vpop.f32.mrb[0].mxu0
        %v776 = vadd.f32 %v692, %v775
        %v777 = vpop.f32.mrb[0].mxu0
        %778 = vmatprep.mubr.f32.mxu0 0.0
        %779 = vmatmul.mubr.f32.gmra.mrb[0].mxu0 %v675
        %v780 = vpop.f32.mrb[0].mxu0
        %v781 = vadd.f32 %v692, %v780
        %v782 = vpop.f32.mrb[0].mxu0
        %783 = vmatprep.mubr.f32.mxu0 0.0
        %784 = vmatmul.mubr.f32.gmra.mrb[0].mxu0 %v676
        %v785 = vpop.f32.mrb[0].mxu0
        %v786 = vadd.f32 %v692, %v785
        %v787 = vpop.f32.mrb[0].mxu0
        %788 = vmatprep.mubr.f32.mxu0 0.0
        %789 = vmatmul.mubr.f32.gmra.mrb[0].mxu0 %v677
        %v790 = vpop.f32.mrb[0].mxu0
        %v791 = vadd.f32 %v692, %v790
        %v792 = vpop.f32.mrb[0].mxu0
        %793 = vmatprep.mubr.f32.mxu0 0.0
        %794 = vmatmul.mubr.f32.gmra.mrb[0].mxu0 %v678
        %v795 = vpop.f32.mrb[0].mxu0
        %v796 = vadd.f32 %v692, %v795
        %v797 = vpop.f32.mrb[0].mxu0
        %798 = vmatprep.mubr.f32.mxu0 0.0
        %799 = vmatmul.mubr.f32.gmra.mrb[0].mxu0 %v679
        %v800 = vpop.f32.mrb[0].mxu0
        %v801 = vadd.f32 %v692, %v800
        %v802 = vpop.f32.mrb[0].mxu0
        %803 = vmatprep.mubr.f32.mxu0 0.0
        %804 = vmatmul.mubr.f32.gmra.mrb[0].mxu0 %v680
        %v805 = vpop.f32.mrb[0].mxu0
        %v806 = vadd.f32 %v692, %v805
        %v807 = vpop.f32.mrb[0].mxu0
        %808 = vmatprep.mubr.f32.mxu0 0.0
        %809 = vmatmul.mubr.f32.gmra.mrb[0].mxu0 %v681
        %v810 = vpop.f32.mrb[0].mxu0
        %v811 = vadd.f32 %v692, %v810
        %v812 = vpop.f32.mrb[0].mxu0
        %813 = vmatprep.mubr.f32.mxu0 0.0
        %814 = vmatmul.mubr.f32.gmra.mrb[0].mxu0 %v682
        %v815 = vpop.f32.mrb[0].mxu0
        %v816 = vadd.f32 %v692, %v815
        %v817 = vpop.f32.mrb[0].mxu0
        %818 = vmatprep.mubr.f32.mxu0 0.0
        %819 = vmatmul.mubr.f32.gmra.mrb[0].mxu0 %v683
        %v820 = vpop.f32.mrb[0].mxu0
        %v821 = vadd.f32 %v692, %v820
        %v822 = vpop.f32.mrb[0].mxu0
        %823 = vmatprep.mubr.f32.mxu0 0.0
        %824 = vmatmul.mubr.f32.gmra.mrb[0].mxu0 %v684
        %v825 = vpop.f32.mrb[0].mxu0
        %v826 = vadd.f32 %v692, %v825
        %v827 = vpop.f32.mrb[0].mxu0
        %828 = vmatprep.mubr.f32.mxu0 0.0
        %829 = vmatmul.mubr.f32.gmra.mrb[0].mxu0 %v685
        %v830 = vpop.f32.mrb[0].mxu0
        %v831 = vadd.f32 %v692, %v830
        %v832 = vpop.f32.mrb[0].mxu0
        %833 = vmatprep.mubr.f32.mxu0 0.0
        %834 = vmatmul.mubr.f32.gmra.mrb[0].mxu0 %v686
        %v835 = vpop.f32.mrb[0].mxu0
        %v836 = vadd.f32 %v692, %v835
        %v837 = vpop.f32.mrb[0].mxu0
        %838 = vdwg.mxu0
        %v839 = vmax.f32 %v761, 0.0
        %v840 = vmax.f32 %v766, 0.0
        %v841 = vmax.f32 %v771, 0.0
        %v842 = vmax.f32 %v776, 0.0
        %v843 = vmax.f32 %v781, 0.0
        %v844 = vmax.f32 %v786, 0.0
        %v845 = vmax.f32 %v791, 0.0
        %v846 = vmax.f32 %v796, 0.0
        %v847 = vmax.f32 %v801, 0.0
        %v848 = vmax.f32 %v806, 0.0
        %v849 = vmax.f32 %v811, 0.0
        %v850 = vmax.f32 %v816, 0.0
        %v851 = vmax.f32 %v821, 0.0
        %v852 = vmax.f32 %v826, 0.0
        %v853 = vmax.f32 %v831, 0.0
        %v854 = vmax.f32 %v836, 0.0
        %855 = vst [vmem:[#allocation2] sm:$0xff] %v839
        %856 = vst [vmem:[#allocation2 + $0x8] sm:$0xff] %v840
        %857 = vst [vmem:[#allocation2 + $0x10] sm:$0xff] %v841
        %858 = vst [vmem:[#allocation2 + $0x18] sm:$0xff] %v842
        %859 = vst [vmem:[#allocation2 + $0x20] sm:$0xff] %v843
        %860 = vst [vmem:[#allocation2 + $0x28] sm:$0xff] %v844
        %861 = vst [vmem:[#allocation2 + $0x30] sm:$0xff] %v845
        %862 = vst [vmem:[#allocation2 + $0x38] sm:$0xff] %v846
        %863 = vst [vmem:[#allocation2 + $0x40] sm:$0xff] %v847
        %864 = vst [vmem:[#allocation2 + $0x48] sm:$0xff] %v848
        %865 = vst [vmem:[#allocation2 + $0x50] sm:$0xff] %v849
        %866 = vst [vmem:[#allocation2 + $0x58] sm:$0xff] %v850
        %867 = vst [vmem:[#allocation2 + $0x60] sm:$0xff] %v851
        %868 = vst [vmem:[#allocation2 + $0x68] sm:$0xff] %v852
        %869 = vst [vmem:[#allocation2 + $0x70] sm:$0xff] %v853
        %870 = vst [vmem:[#allocation2 + $0x78] sm:$0xff] %v854
        %p871 = scmp.eq.s32.totalorder %s30, 1
        // Predicated region
        $region57: #{tpu_custom_call.1} parent=39 // pred_check
          %p872 = pneg %p871
        $region58: #{tpu_custom_call.1} parent=39 // pred_check_branch
          %874 = sbr.rel (%p872) target = $region60
        $region59: #{tpu_custom_call.1} parent=39 // pred_region
          %875 = vst [vmem:[%s342] sm:$0xff] %v839
          %876 = vst [vmem:[%s342 + $0x8] sm:$0xff] %v840
          %877 = vst [vmem:[%s342 + $0x10] sm:$0xff] %v841
          %878 = vst [vmem:[%s342 + $0x18] sm:$0xff] %v842
          %879 = vst [vmem:[%s342 + $0x20] sm:$0xff] %v843
          %880 = vst [vmem:[%s342 + $0x28] sm:$0xff] %v844
          %881 = vst [vmem:[%s342 + $0x30] sm:$0xff] %v845
          %882 = vst [vmem:[%s342 + $0x38] sm:$0xff] %v846
          %883 = vst [vmem:[%s342 + $0x40] sm:$0xff] %v847
          %884 = vst [vmem:[%s342 + $0x48] sm:$0xff] %v848
          %885 = vst [vmem:[%s342 + $0x50] sm:$0xff] %v849
          %886 = vst [vmem:[%s342 + $0x58] sm:$0xff] %v850
          %887 = vst [vmem:[%s342 + $0x60] sm:$0xff] %v851
          %888 = vst [vmem:[%s342 + $0x68] sm:$0xff] %v852
          %889 = vst [vmem:[%s342 + $0x70] sm:$0xff] %v853
          %890 = vst [vmem:[%s342 + $0x78] sm:$0xff] %v854
        $region60: #{tpu_custom_call.1} parent=39 // pred_fallthru
          _
        %s891 = sand.u32 %s170, 1
        %s892 = scalar_lea.sflag [#allocation5], %s891
        %s893 = sand.u32 %s170, 1
        %s894 = smul.addr %s893, 128
        %s895 = scalar_lea.vmem [#allocation9], %s894
        // Predicated region
        $region61: #{tpu_custom_call.1} parent=39 // pred_check
          %p896 = pneg %p180
        $region62: #{tpu_custom_call.1} parent=39 // pred_check_branch
          %898 = sbr.rel (%p896) target = $region64
        $region63: #{tpu_custom_call.1} parent=39 // pred_region
          %s900 = ssub.s32 2048, 2048
          %901 = vsyncadd %s892, %s900
          %s902 = smul.addr %s29, 16
          %s903 = smul.addr %s902, 128
          %s904 = scalar_lea.hbm %s5, %s903
          %s905 = sshll.u32 %s895, 4
          %s906 = int_to_ptr.vmem [resolvable:$true] %s905
          %911 = dma.vmem_to_hbm [thread:$0]  %s906, 2048, %s904, %s892, 128, 128, 8
        $region64: #{tpu_custom_call.1} parent=39 // pred_fallthru
          _
      $region40: #{tpu_custom_call.1} parent=5 // pred_fallthru
        _
      %p912 = scmp.le.s32.totalorder 2, %s20
      // Predicated region
      $region65: #{tpu_custom_call.1} parent=5 // pred_check
        %p913 = pneg %p912
      $region66: #{tpu_custom_call.1} parent=5 // pred_check_branch
        %915 = sbr.rel (%p913) target = $region68
      $region67: #{tpu_custom_call.1} parent=5 // pred_region
        %s916 = ssub.s32 %s20, 2
        // Predicated region
        $region69: #{tpu_custom_call.1} parent=67 // pred_check
          %p917 = pneg %p186
        $region70: #{tpu_custom_call.1} parent=67 // pred_check_branch
          %919 = sbr.rel (%p917) target = $region72
        $region71: #{tpu_custom_call.1} parent=67 // pred_region
          %s920 = sand.u32 %s171, 1
          %s921 = scalar_lea.sflag [#allocation5], %s920
          %s922 = sand.u32 %s171, 1
          %s923 = smul.addr %s922, 128
          %s924 = scalar_lea.vmem [#allocation9], %s923
          %925 = dma.done %s921, 2048
        $region72: #{tpu_custom_call.1} parent=67 // pred_fallthru
          _
      $region68: #{tpu_custom_call.1} parent=5 // pred_fallthru
        _
    $region6: #{tpu_custom_call.1} parent=1 // loop_footer
      %s24 = sadd.s32 1, %s20
    $region7: #{tpu_custom_call.1} parent=1 // loop_footer_branch
      %19 = sbr.rel target = $region3
    $region8: #{tpu_custom_call.1} parent=1 // loop_exit
      _
    %926 = vsyncpa [#allocation4], 1
    %s927 = scalar_lea.sflag [#allocation4], 1
    %928 = vsyncpa %s927, 1
    %929 = vsyncpa [#allocation7], 1
    %s930 = scalar_lea.sflag [#allocation7], 1
    %931 = vsyncpa %s930, 1
    %932 = vsyncpa [#allocation5], 1
    %s933 = scalar_lea.sflag [#allocation5], 1
    %934 = vsyncpa %s933, 1

</llo_original>
